<compile_context>
chip_gen: v6e
topology: v6e:2x2x1
jax: 0.10.0
libtpu: 0.0.40
codegen_flags: <defaults>
</compile_context>

<pallas_src>
import functools

import jax
import jax.numpy as jnp
from jax.experimental import pallas as pl
from jax.experimental.pallas import tpu as pltpu


def relu_lstm_kernel(x_ref, w_ref, b_ref, out_ref, hy_ref, cy_ref,
                     h_scr, c_scr, *, num_layers, hidden_size, t_block):
    """One grid step == t_block timesteps of the full stacked recurrence."""
    t = pl.program_id(0)
    H = hidden_size
    L = num_layers

    # hidden=None path of the torch module: zero initial state (init once).
    @pl.when(t == 0)
    def _():
        h_scr[...] = jnp.zeros_like(h_scr)
        c_scr[...] = jnp.zeros_like(c_scr)

    h = h_scr[...]                                  # (B, H) carried state
    c = c_scr[...]
    last_h = []                                     # per-layer state at final step
    last_c = []
    for step in range(t_block):                     # static unroll over the block
        layer_input = x_ref[step]                   # (B, D)
        for l in range(L):                          # static unroll (L is small)
            zin = jnp.concatenate([layer_input, h], axis=1)          # (B, D+H)
            gates = jnp.dot(zin, w_ref[l],
                            preferred_element_type=jnp.float32) + b_ref[l]
            sig = jax.nn.sigmoid(gates[:, 0:3 * H])                  # i|f|o contiguous
            i_gate = sig[:, 0 * H:1 * H]
            f_gate = sig[:, 1 * H:2 * H]
            o_gate = sig[:, 2 * H:3 * H]
            c_gate = jnp.maximum(gates[:, 3 * H:4 * H], 0.0)         # ReLU cell gate
            c = f_gate * c + i_gate * c_gate
            h = o_gate * jnp.maximum(c, 0.0)                         # ReLU output act
            if step == t_block - 1:                 # capture final per-layer state
                last_h.append(h)
                last_c.append(c)
            # TODO(synk): training-mode dropout (p>0) is stochastic; module run with p=0.
            layer_input = h
        out_ref[step] = h                           # last-layer hidden, live value

    # Persist the recurrent state for the next grid step.
    h_scr[...] = h
    c_scr[...] = c

    # Final per-layer states: write only once, on the very last timestep.
    @pl.when(t == pl.num_programs(0) - 1)
    def _():
        for l in range(L):
            hy_ref[l] = last_h[l]
            cy_ref[l] = last_c[l]


def _squeeze_if(x, dim):
    # torch .squeeze(dim) semantics: only squeeze when that dim has size 1.
    return jnp.squeeze(x, dim) if x.shape[dim] == 1 else x


def _postprocess(out_tm, hy_lbh, cy_lbh, batch_first):
    # Reproduce the torch module's output reshaping exactly.
    output = out_tm                           # (T, B, H)
    hy = hy_lbh[:, None, :, :]                # (L, 1, B, H)  (torch stack of (1,B,H))
    cy = cy_lbh[:, None, :, :]
    if batch_first:
        hy = jnp.swapaxes(hy, 1, 2)           # (L, B, 1, H)
        cy = jnp.swapaxes(cy, 1, 2)
        output = jnp.swapaxes(output, 0, 1)   # (B, T, H)
        hy = jnp.expand_dims(_squeeze_if(_squeeze_if(hy, 0), 1), 1)
        cy = jnp.expand_dims(_squeeze_if(_squeeze_if(cy, 0), 1), 1)
    else:
        hy = jnp.expand_dims(_squeeze_if(_squeeze_if(hy, 0), 1), 0)
        cy = jnp.expand_dims(_squeeze_if(_squeeze_if(cy, 0), 1), 0)
    return output, (hy, cy)


def _pick_time_block(T, max_block=16):
    # Largest divisor of T not exceeding max_block (keeps the grid exact).
    for b in range(min(T, max_block), 0, -1):
        if T % b == 0:
            return b
    return 1


def relu_lstm_forward(x, w_ih, b_ih, w_hh, b_hh, *, hidden_size, num_layers,
                      batch_first=True, weight_dtype=jnp.float32,
                      time_block=None):
    """Pallas implementation of ReLULSTM.forward(x, hidden=None)."""
    x = x.astype(jnp.float32)
    x_tm = jnp.swapaxes(x, 0, 1) if batch_first else x       # (T, B, D)
    T, B, D = x_tm.shape
    H = hidden_size
    L = num_layers
    if L > 1 and D != H:
        raise ValueError("multi-layer ReLULSTM requires input_size == hidden_size "
                         "(same implicit requirement as the torch module)")

    t_blk = time_block if time_block is not None else _pick_time_block(T)
    assert T % t_blk == 0, "time_block must divide the sequence length"

    # Fused weights: [w_ih^T ; w_hh^T] stacked along K -> (L, D+H, 4H); summed biases.
    wih_t = jnp.swapaxes(w_ih, 1, 2).astype(jnp.float32)      # (L, D, 4H)
    whh_t = jnp.swapaxes(w_hh, 1, 2).astype(jnp.float32)      # (L, H, 4H)
    w_cat = jnp.concatenate([wih_t, whh_t], axis=1)           # (L, D+H, 4H)
    b_sum = (b_ih + b_hh).astype(jnp.float32)[:, None, :]     # (L, 1, 4H)

    # Reorder gate columns from torch's (i, f, c, o) to (i, f, o, c) so the
    # three sigmoid gates are one contiguous 3H slice inside the kernel.
    def _reorder(a):
        return jnp.concatenate(
            [a[..., 0:2 * H], a[..., 3 * H:4 * H], a[..., 2 * H:3 * H]], axis=-1)

    # NOTE(perf, v6e/v7x): at production sizes pass weight_dtype=jnp.bfloat16 to
    # halve weight DMA bytes / resident VMEM; kept f32 here for parity with the
    # f32 reference at tight tolerance.
    w_cat = _reorder(w_cat).astype(weight_dtype)
    b_sum = _reorder(b_sum)

    kernel = functools.partial(relu_lstm_kernel, num_layers=L, hidden_size=H,
                               t_block=t_blk)

    out_tm, hy_lbh, cy_lbh = pl.pallas_call(
        kernel,
        out_shape=(
            jax.ShapeDtypeStruct((T, B, H), jnp.float32),
            jax.ShapeDtypeStruct((L, B, H), jnp.float32),
            jax.ShapeDtypeStruct((L, B, H), jnp.float32),
        ),
        grid_spec=pltpu.PrefetchScalarGridSpec(
            num_scalar_prefetch=0,
            grid=(T // t_blk,),
            in_specs=[
                pl.BlockSpec((t_blk, B, D), lambda t: (t, 0, 0)),      # x time-block
                pl.BlockSpec((L, D + H, 4 * H), lambda t: (0, 0, 0)),  # fused weights
                pl.BlockSpec((L, 1, 4 * H), lambda t: (0, 0, 0)),      # fused bias
            ],
            out_specs=(
                pl.BlockSpec((t_blk, B, H), lambda t: (t, 0, 0)),      # per-step output
                pl.BlockSpec((L, B, H), lambda t: (0, 0, 0)),          # final per-layer h
                pl.BlockSpec((L, B, H), lambda t: (0, 0, 0)),          # final per-layer c
            ),
            scratch_shapes=[
                pltpu.VMEM((B, H), jnp.float32),   # h state (persists across grid)
                pltpu.VMEM((B, H), jnp.float32),   # c state
            ],
        ),
        compiler_params=pltpu.CompilerParams(
            dimension_semantics=("arbitrary",)),   # sequential recurrence over time
    )(x_tm, w_cat, b_sum)

    return _postprocess(out_tm, hy_lbh, cy_lbh, batch_first)


def relu_lstm_reference(x, w_ih, b_ih, w_hh, b_hh, *, hidden_size, num_layers,
                        batch_first=True):
    """Pure-JAX reference mirroring the PyTorch forward exactly."""
    x = x.astype(jnp.float32)
    x_tm = jnp.swapaxes(x, 0, 1) if batch_first else x
    T, B, D = x_tm.shape
    H = hidden_size
    h = jnp.zeros((B, H), jnp.float32)
    c = jnp.zeros((B, H), jnp.float32)
    outs = []
    hy_l = cy_l = None
    for t in range(T):
        layer_input = x_tm[t]
        hy_l, cy_l = [], []
        for l in range(num_layers):
            gates = (layer_input @ w_ih[l].T + b_ih[l]
                     + h @ w_hh[l].T + b_hh[l])
            i_g = jax.nn.sigmoid(gates[:, 0 * H:1 * H])
            f_g = jax.nn.sigmoid(gates[:, 1 * H:2 * H])
            c_g = jnp.maximum(gates[:, 2 * H:3 * H], 0.0)
            o_g = jax.nn.sigmoid(gates[:, 3 * H:4 * H])
            c = f_g * c + i_g * c_g
            h = o_g * jnp.maximum(c, 0.0)
            hy_l.append(h)
            cy_l.append(c)
            layer_input = h
        outs.append(h)
    out_tm = jnp.stack(outs, 0)                    # (T, B, H)
    hy_lbh = jnp.stack(hy_l, 0)                    # (L, B, H)
    cy_lbh = jnp.stack(cy_l, 0)
    return _postprocess(out_tm, hy_lbh, cy_lbh, batch_first)


if __name__ == "__main__":
    # Module config (dropout=0.0 so forward is deterministic).
    input_size = 32
    hidden_size = 32
    num_layers = 2
    batch_first = True
    B, T = 2, 8

    key = jax.random.PRNGKey(0)
    k_x, k0, k1, k2, k3 = jax.random.split(key, 5)

    x = jax.random.normal(k_x, (B, T, input_size), dtype=jnp.float32)

    # torch.nn.Linear default init: U(-1/sqrt(fan_in), 1/sqrt(fan_in))
    b_in = 1.0 / (input_size ** 0.5)
    b_hid = 1.0 / (hidden_size ** 0.5)
    w_ih = jax.random.uniform(k0, (num_layers, 4 * hidden_size, input_size),
                              minval=-b_in, maxval=b_in, dtype=jnp.float32)
    b_ih = jax.random.uniform(k1, (num_layers, 4 * hidden_size),
                              minval=-b_in, maxval=b_in, dtype=jnp.float32)
    w_hh = jax.random.uniform(k2, (num_layers, 4 * hidden_size, hidden_size),
                              minval=-b_hid, maxval=b_hid, dtype=jnp.float32)
    b_hh = jax.random.uniform(k3, (num_layers, 4 * hidden_size),
                              minval=-b_hid, maxval=b_hid, dtype=jnp.float32)

    out, (hy, cy) = relu_lstm_forward(
        x, w_ih, b_ih, w_hh, b_hh,
        hidden_size=hidden_size, num_layers=num_layers, batch_first=batch_first)
    jax.block_until_ready((out, hy, cy))

    ref_out, (ref_hy, ref_cy) = relu_lstm_reference(
        x, w_ih, b_ih, w_hh, b_hh,
        hidden_size=hidden_size, num_layers=num_layers, batch_first=batch_first)

    assert out.shape == ref_out.shape and hy.shape == ref_hy.shape and cy.shape == ref_cy.shape
    # Fused-matmul / pre-summed-bias accumulation order differs slightly from
    # the reference's split matmuls; 1e-4 still catches any real gate/order bug.
    assert jnp.allclose(out, ref_out, atol=1e-4, rtol=1e-4)
    assert jnp.allclose(hy, ref_hy, atol=1e-4, rtol=1e-4)
    assert jnp.allclose(cy, ref_cy, atol=1e-4, rtol=1e-4)

    print("KERNEL_OK")
</pallas_src>

<mosaic_0001>
module attributes {stable_mosaic.version = 11 : i64} {
  func.func @relu_lstm_kernel(%arg0: i32, %arg1: memref<8x2x32xf32, #tpu.memory_space<vmem>>, %arg2: memref<2x64x128xf32, #tpu.memory_space<vmem>>, %arg3: memref<2x1x128xf32, #tpu.memory_space<vmem>>, %arg4: memref<8x2x32xf32, #tpu.memory_space<vmem>>, %arg5: memref<2x2x32xf32, #tpu.memory_space<vmem>>, %arg6: memref<2x2x32xf32, #tpu.memory_space<vmem>>, %arg7: memref<2x32xf32, #tpu.memory_space<vmem>>, %arg8: memref<2x32xf32, #tpu.memory_space<vmem>>) attributes {dimension_semantics = [#tpu.dimension_semantics<arbitrary>], iteration_bounds = array<i64: 1>, scalar_prefetch = 0 : i64, scratch_operands = 2 : i64, tpu.core_type = #tpu.core_type<tc>, window_params = [{transform_indices = @transform_0, window_bounds = array<i64: 8, 2, 32>}, {pipeline_mode = #tpu.pipeline_mode<synchronous>, transform_indices = @transform_1, window_bounds = array<i64: 2, 64, 128>}, {pipeline_mode = #tpu.pipeline_mode<synchronous>, transform_indices = @transform_2, window_bounds = array<i64: 2, 1, 128>}, {transform_indices = @transform_3, window_bounds = array<i64: 8, 2, 32>}, {pipeline_mode = #tpu.pipeline_mode<synchronous>, transform_indices = @transform_4, window_bounds = array<i64: 2, 2, 32>}, {pipeline_mode = #tpu.pipeline_mode<synchronous>, transform_indices = @transform_5, window_bounds = array<i64: 2, 2, 32>}]} {
    %c0_i32 = arith.constant 0 : i32
    %0 = arith.cmpi eq, %arg0, %c0_i32 : i32
    %1 = arith.extui %0 : i1 to i32
    %c0_i32_0 = arith.constant 0 : i32
    %2 = arith.cmpi ne, %1, %c0_i32_0 : i32
    scf.if %2 {
      %cst_210 = arith.constant 0.000000e+00 : f32
      %466 = vector.broadcast %cst_210 : f32 to vector<2x32xf32>
      %c0_211 = arith.constant 0 : index
      %c0_212 = arith.constant 0 : index
      %467 = vector.load %arg7[%c0_211, %c0_212] : memref<2x32xf32, #tpu.memory_space<vmem>>, vector<2x32xf32>
      tpu.vector_store %arg7[%c0_211, %c0_212], %466 {strides = array<i32>} : memref<2x32xf32, #tpu.memory_space<vmem>>, vector<2x32xf32>,
      %cst_213 = arith.constant 0.000000e+00 : f32
      %468 = vector.broadcast %cst_213 : f32 to vector<2x32xf32>
      %c0_214 = arith.constant 0 : index
      %c0_215 = arith.constant 0 : index
      %469 = vector.load %arg8[%c0_214, %c0_215] : memref<2x32xf32, #tpu.memory_space<vmem>>, vector<2x32xf32>
      tpu.vector_store %arg8[%c0_214, %c0_215], %468 {strides = array<i32>} : memref<2x32xf32, #tpu.memory_space<vmem>>, vector<2x32xf32>,
    } else {
    }
    %c0 = arith.constant 0 : index
    %c0_1 = arith.constant 0 : index
    %3 = vector.load %arg7[%c0, %c0_1] : memref<2x32xf32, #tpu.memory_space<vmem>>, vector<2x32xf32>
    %c0_2 = arith.constant 0 : index
    %c0_3 = arith.constant 0 : index
    %4 = vector.load %arg8[%c0_2, %c0_3] : memref<2x32xf32, #tpu.memory_space<vmem>>, vector<2x32xf32>
    %c0_4 = arith.constant 0 : index
    %c0_5 = arith.constant 0 : index
    %c0_6 = arith.constant 0 : index
    %5 = vector.load %arg1[%c0_4, %c0_5, %c0_6] : memref<8x2x32xf32, #tpu.memory_space<vmem>>, vector<1x2x32xf32>
    %6 = vector.shape_cast %5 : vector<1x2x32xf32> to vector<2x32xf32>
    %7 = tpu.concatenate %6, %3 in 1 : vector<2x32xf32>, vector<2x32xf32> -> vector<2x64xf32>
    %c0_7 = arith.constant 0 : index
    %c0_8 = arith.constant 0 : index
    %c0_9 = arith.constant 0 : index
    %8 = vector.load %arg2[%c0_7, %c0_8, %c0_9] : memref<2x64x128xf32, #tpu.memory_space<vmem>>, vector<1x64x128xf32>
    %9 = vector.shape_cast %8 : vector<1x64x128xf32> to vector<64x128xf32>
    %cst = arith.constant dense<0.000000e+00> : vector<2x128xf32>
    %10 = tpu.matmul %7, %9, %cst {dimension_numbers = #tpu.dot_dimension_numbers<[1], [0], [0], [1], [0, 0, 1, 1], [], []>} : vector<2x64xf32>, vector<64x128xf32>, vector<2x128xf32> -> vector<2x128xf32>
    %c0_10 = arith.constant 0 : index
    %c0_11 = arith.constant 0 : index
    %c0_12 = arith.constant 0 : index
    %11 = vector.load %arg3[%c0_10, %c0_11, %c0_12] : memref<2x1x128xf32, #tpu.memory_space<vmem>>, vector<1x1x128xf32>
    %12 = vector.shape_cast %11 : vector<1x1x128xf32> to vector<1x128xf32>
    %13 = vector.broadcast %12 : vector<1x128xf32> to vector<2x128xf32>
    %14 = arith.addf %10, %13 : vector<2x128xf32>
    %15 = vector.extract_strided_slice %14 {offsets = [0, 0], sizes = [2, 96], strides = [1, 1]} : vector<2x128xf32> to vector<2x96xf32>
    %16 = arith.negf %15 : vector<2x96xf32>
    %17 = math.exp %16 : vector<2x96xf32>
    %cst_13 = arith.constant 1.000000e+00 : f32
    %18 = vector.broadcast %cst_13 : f32 to vector<2x96xf32>
    %19 = arith.addf %18, %17 : vector<2x96xf32>
    %20 = arith.divf %18, %19 : vector<2x96xf32>
    %21 = vector.extract_strided_slice %20 {offsets = [0, 0], sizes = [2, 32], strides = [1, 1]} : vector<2x96xf32> to vector<2x32xf32>
    %22 = vector.extract_strided_slice %20 {offsets = [0, 32], sizes = [2, 32], strides = [1, 1]} : vector<2x96xf32> to vector<2x32xf32>
    %23 = vector.extract_strided_slice %20 {offsets = [0, 64], sizes = [2, 32], strides = [1, 1]} : vector<2x96xf32> to vector<2x32xf32>
    %24 = vector.extract_strided_slice %14 {offsets = [0, 96], sizes = [2, 32], strides = [1, 1]} : vector<2x128xf32> to vector<2x32xf32>
    %cst_14 = arith.constant 0.000000e+00 : f32
    %25 = vector.broadcast %cst_14 : f32 to vector<2x32xf32>
    %26 = arith.maximumf %24, %25 : vector<2x32xf32>
    %27 = arith.mulf %22, %4 : vector<2x32xf32>
    %28 = arith.mulf %21, %26 : vector<2x32xf32>
    %29 = arith.addf %27, %28 : vector<2x32xf32>
    %cst_15 = arith.constant 0.000000e+00 : f32
    %30 = vector.broadcast %cst_15 : f32 to vector<2x32xf32>
    %31 = arith.maximumf %29, %30 : vector<2x32xf32>
    %32 = arith.mulf %23, %31 : vector<2x32xf32>
    %33 = tpu.concatenate %32, %32 in 1 : vector<2x32xf32>, vector<2x32xf32> -> vector<2x64xf32>
    %c1 = arith.constant 1 : index
    %c0_16 = arith.constant 0 : index
    %c0_17 = arith.constant 0 : index
    %34 = vector.load %arg2[%c1, %c0_16, %c0_17] : memref<2x64x128xf32, #tpu.memory_space<vmem>>, vector<1x64x128xf32>
    %35 = vector.shape_cast %34 : vector<1x64x128xf32> to vector<64x128xf32>
    %cst_18 = arith.constant dense<0.000000e+00> : vector<2x128xf32>
    %36 = tpu.matmul %33, %35, %cst_18 {dimension_numbers = #tpu.dot_dimension_numbers<[1], [0], [0], [1], [0, 0, 1, 1], [], []>} : vector<2x64xf32>, vector<64x128xf32>, vector<2x128xf32> -> vector<2x128xf32>
    %c1_19 = arith.constant 1 : index
    %c0_20 = arith.constant 0 : index
    %c0_21 = arith.constant 0 : index
    %37 = vector.load %arg3[%c1_19, %c0_20, %c0_21] : memref<2x1x128xf32, #tpu.memory_space<vmem>>, vector<1x1x128xf32>
    %38 = vector.shape_cast %37 : vector<1x1x128xf32> to vector<1x128xf32>
    %39 = vector.broadcast %38 : vector<1x128xf32> to vector<2x128xf32>
    %40 = arith.addf %36, %39 : vector<2x128xf32>
    %41 = vector.extract_strided_slice %40 {offsets = [0, 0], sizes = [2, 96], strides = [1, 1]} : vector<2x128xf32> to vector<2x96xf32>
    %42 = arith.negf %41 : vector<2x96xf32>
    %43 = math.exp %42 : vector<2x96xf32>
    %cst_22 = arith.constant 1.000000e+00 : f32
    %44 = vector.broadcast %cst_22 : f32 to vector<2x96xf32>
    %45 = arith.addf %44, %43 : vector<2x96xf32>
    %46 = arith.divf %44, %45 : vector<2x96xf32>
    %47 = vector.extract_strided_slice %46 {offsets = [0, 0], sizes = [2, 32], strides = [1, 1]} : vector<2x96xf32> to vector<2x32xf32>
    %48 = vector.extract_strided_slice %46 {offsets = [0, 32], sizes = [2, 32], strides = [1, 1]} : vector<2x96xf32> to vector<2x32xf32>
    %49 = vector.extract_strided_slice %46 {offsets = [0, 64], sizes = [2, 32], strides = [1, 1]} : vector<2x96xf32> to vector<2x32xf32>
    %50 = vector.extract_strided_slice %40 {offsets = [0, 96], sizes = [2, 32], strides = [1, 1]} : vector<2x128xf32> to vector<2x32xf32>
    %cst_23 = arith.constant 0.000000e+00 : f32
    %51 = vector.broadcast %cst_23 : f32 to vector<2x32xf32>
    %52 = arith.maximumf %50, %51 : vector<2x32xf32>
    %53 = arith.mulf %48, %29 : vector<2x32xf32>
    %54 = arith.mulf %47, %52 : vector<2x32xf32>
    %55 = arith.addf %53, %54 : vector<2x32xf32>
    %cst_24 = arith.constant 0.000000e+00 : f32
    %56 = vector.broadcast %cst_24 : f32 to vector<2x32xf32>
    %57 = arith.maximumf %55, %56 : vector<2x32xf32>
    %58 = arith.mulf %49, %57 : vector<2x32xf32>
    %c0_25 = arith.constant 0 : index
    %c0_26 = arith.constant 0 : index
    %c0_27 = arith.constant 0 : index
    %59 = vector.load %arg4[%c0_25, %c0_26, %c0_27] : memref<8x2x32xf32, #tpu.memory_space<vmem>>, vector<1x2x32xf32>
    %60 = vector.shape_cast %59 : vector<1x2x32xf32> to vector<2x32xf32>
    %61 = vector.shape_cast %58 : vector<2x32xf32> to vector<1x2x32xf32>
    tpu.vector_store %arg4[%c0_25, %c0_26, %c0_27], %61 {strides = array<i32>} : memref<8x2x32xf32, #tpu.memory_space<vmem>>, vector<1x2x32xf32>,
    %c1_28 = arith.constant 1 : index
    %c0_29 = arith.constant 0 : index
    %c0_30 = arith.constant 0 : index
    %62 = vector.load %arg1[%c1_28, %c0_29, %c0_30] : memref<8x2x32xf32, #tpu.memory_space<vmem>>, vector<1x2x32xf32>
    %63 = vector.shape_cast %62 : vector<1x2x32xf32> to vector<2x32xf32>
    %64 = tpu.concatenate %63, %58 in 1 : vector<2x32xf32>, vector<2x32xf32> -> vector<2x64xf32>
    %c0_31 = arith.constant 0 : index
    %c0_32 = arith.constant 0 : index
    %c0_33 = arith.constant 0 : index
    %65 = vector.load %arg2[%c0_31, %c0_32, %c0_33] : memref<2x64x128xf32, #tpu.memory_space<vmem>>, vector<1x64x128xf32>
    %66 = vector.shape_cast %65 : vector<1x64x128xf32> to vector<64x128xf32>
    %cst_34 = arith.constant dense<0.000000e+00> : vector<2x128xf32>
    %67 = tpu.matmul %64, %66, %cst_34 {dimension_numbers = #tpu.dot_dimension_numbers<[1], [0], [0], [1], [0, 0, 1, 1], [], []>} : vector<2x64xf32>, vector<64x128xf32>, vector<2x128xf32> -> vector<2x128xf32>
    %c0_35 = arith.constant 0 : index
    %c0_36 = arith.constant 0 : index
    %c0_37 = arith.constant 0 : index
    %68 = vector.load %arg3[%c0_35, %c0_36, %c0_37] : memref<2x1x128xf32, #tpu.memory_space<vmem>>, vector<1x1x128xf32>
    %69 = vector.shape_cast %68 : vector<1x1x128xf32> to vector<1x128xf32>
    %70 = vector.broadcast %69 : vector<1x128xf32> to vector<2x128xf32>
    %71 = arith.addf %67, %70 : vector<2x128xf32>
    %72 = vector.extract_strided_slice %71 {offsets = [0, 0], sizes = [2, 96], strides = [1, 1]} : vector<2x128xf32> to vector<2x96xf32>
    %73 = arith.negf %72 : vector<2x96xf32>
    %74 = math.exp %73 : vector<2x96xf32>
    %cst_38 = arith.constant 1.000000e+00 : f32
    %75 = vector.broadcast %cst_38 : f32 to vector<2x96xf32>
    %76 = arith.addf %75, %74 : vector<2x96xf32>
    %77 = arith.divf %75, %76 : vector<2x96xf32>
    %78 = vector.extract_strided_slice %77 {offsets = [0, 0], sizes = [2, 32], strides = [1, 1]} : vector<2x96xf32> to vector<2x32xf32>
    %79 = vector.extract_strided_slice %77 {offsets = [0, 32], sizes = [2, 32], strides = [1, 1]} : vector<2x96xf32> to vector<2x32xf32>
    %80 = vector.extract_strided_slice %77 {offsets = [0, 64], sizes = [2, 32], strides = [1, 1]} : vector<2x96xf32> to vector<2x32xf32>
    %81 = vector.extract_strided_slice %71 {offsets = [0, 96], sizes = [2, 32], strides = [1, 1]} : vector<2x128xf32> to vector<2x32xf32>
    %cst_39 = arith.constant 0.000000e+00 : f32
    %82 = vector.broadcast %cst_39 : f32 to vector<2x32xf32>
    %83 = arith.maximumf %81, %82 : vector<2x32xf32>
    %84 = arith.mulf %79, %55 : vector<2x32xf32>
    %85 = arith.mulf %78, %83 : vector<2x32xf32>
    %86 = arith.addf %84, %85 : vector<2x32xf32>
    %cst_40 = arith.constant 0.000000e+00 : f32
    %87 = vector.broadcast %cst_40 : f32 to vector<2x32xf32>
    %88 = arith.maximumf %86, %87 : vector<2x32xf32>
    %89 = arith.mulf %80, %88 : vector<2x32xf32>
    %90 = tpu.concatenate %89, %89 in 1 : vector<2x32xf32>, vector<2x32xf32> -> vector<2x64xf32>
    %c1_41 = arith.constant 1 : index
    %c0_42 = arith.constant 0 : index
    %c0_43 = arith.constant 0 : index
    %91 = vector.load %arg2[%c1_41, %c0_42, %c0_43] : memref<2x64x128xf32, #tpu.memory_space<vmem>>, vector<1x64x128xf32>
    %92 = vector.shape_cast %91 : vector<1x64x128xf32> to vector<64x128xf32>
    %cst_44 = arith.constant dense<0.000000e+00> : vector<2x128xf32>
    %93 = tpu.matmul %90, %92, %cst_44 {dimension_numbers = #tpu.dot_dimension_numbers<[1], [0], [0], [1], [0, 0, 1, 1], [], []>} : vector<2x64xf32>, vector<64x128xf32>, vector<2x128xf32> -> vector<2x128xf32>
    %c1_45 = arith.constant 1 : index
    %c0_46 = arith.constant 0 : index
    %c0_47 = arith.constant 0 : index
    %94 = vector.load %arg3[%c1_45, %c0_46, %c0_47] : memref<2x1x128xf32, #tpu.memory_space<vmem>>, vector<1x1x128xf32>
    %95 = vector.shape_cast %94 : vector<1x1x128xf32> to vector<1x128xf32>
    %96 = vector.broadcast %95 : vector<1x128xf32> to vector<2x128xf32>
    %97 = arith.addf %93, %96 : vector<2x128xf32>
    %98 = vector.extract_strided_slice %97 {offsets = [0, 0], sizes = [2, 96], strides = [1, 1]} : vector<2x128xf32> to vector<2x96xf32>
    %99 = arith.negf %98 : vector<2x96xf32>
    %100 = math.exp %99 : vector<2x96xf32>
    %cst_48 = arith.constant 1.000000e+00 : f32
    %101 = vector.broadcast %cst_48 : f32 to vector<2x96xf32>
    %102 = arith.addf %101, %100 : vector<2x96xf32>
    %103 = arith.divf %101, %102 : vector<2x96xf32>
    %104 = vector.extract_strided_slice %103 {offsets = [0, 0], sizes = [2, 32], strides = [1, 1]} : vector<2x96xf32> to vector<2x32xf32>
    %105 = vector.extract_strided_slice %103 {offsets = [0, 32], sizes = [2, 32], strides = [1, 1]} : vector<2x96xf32> to vector<2x32xf32>
    %106 = vector.extract_strided_slice %103 {offsets = [0, 64], sizes = [2, 32], strides = [1, 1]} : vector<2x96xf32> to vector<2x32xf32>
    %107 = vector.extract_strided_slice %97 {offsets = [0, 96], sizes = [2, 32], strides = [1, 1]} : vector<2x128xf32> to vector<2x32xf32>
    %cst_49 = arith.constant 0.000000e+00 : f32
    %108 = vector.broadcast %cst_49 : f32 to vector<2x32xf32>
    %109 = arith.maximumf %107, %108 : vector<2x32xf32>
    %110 = arith.mulf %105, %86 : vector<2x32xf32>
    %111 = arith.mulf %104, %109 : vector<2x32xf32>
    %112 = arith.addf %110, %111 : vector<2x32xf32>
    %cst_50 = arith.constant 0.000000e+00 : f32
    %113 = vector.broadcast %cst_50 : f32 to vector<2x32xf32>
    %114 = arith.maximumf %112, %113 : vector<2x32xf32>
    %115 = arith.mulf %106, %114 : vector<2x32xf32>
    %c1_51 = arith.constant 1 : index
    %c0_52 = arith.constant 0 : index
    %c0_53 = arith.constant 0 : index
    %116 = vector.load %arg4[%c1_51, %c0_52, %c0_53] : memref<8x2x32xf32, #tpu.memory_space<vmem>>, vector<1x2x32xf32>
    %117 = vector.shape_cast %116 : vector<1x2x32xf32> to vector<2x32xf32>
    %118 = vector.shape_cast %115 : vector<2x32xf32> to vector<1x2x32xf32>
    tpu.vector_store %arg4[%c1_51, %c0_52, %c0_53], %118 {strides = array<i32>} : memref<8x2x32xf32, #tpu.memory_space<vmem>>, vector<1x2x32xf32>,
    %c2 = arith.constant 2 : index
    %c0_54 = arith.constant 0 : index
    %c0_55 = arith.constant 0 : index
    %119 = vector.load %arg1[%c2, %c0_54, %c0_55] : memref<8x2x32xf32, #tpu.memory_space<vmem>>, vector<1x2x32xf32>
    %120 = vector.shape_cast %119 : vector<1x2x32xf32> to vector<2x32xf32>
    %121 = tpu.concatenate %120, %115 in 1 : vector<2x32xf32>, vector<2x32xf32> -> vector<2x64xf32>
    %c0_56 = arith.constant 0 : index
    %c0_57 = arith.constant 0 : index
    %c0_58 = arith.constant 0 : index
    %122 = vector.load %arg2[%c0_56, %c0_57, %c0_58] : memref<2x64x128xf32, #tpu.memory_space<vmem>>, vector<1x64x128xf32>
    %123 = vector.shape_cast %122 : vector<1x64x128xf32> to vector<64x128xf32>
    %cst_59 = arith.constant dense<0.000000e+00> : vector<2x128xf32>
    %124 = tpu.matmul %121, %123, %cst_59 {dimension_numbers = #tpu.dot_dimension_numbers<[1], [0], [0], [1], [0, 0, 1, 1], [], []>} : vector<2x64xf32>, vector<64x128xf32>, vector<2x128xf32> -> vector<2x128xf32>
    %c0_60 = arith.constant 0 : index
    %c0_61 = arith.constant 0 : index
    %c0_62 = arith.constant 0 : index
    %125 = vector.load %arg3[%c0_60, %c0_61, %c0_62] : memref<2x1x128xf32, #tpu.memory_space<vmem>>, vector<1x1x128xf32>
    %126 = vector.shape_cast %125 : vector<1x1x128xf32> to vector<1x128xf32>
    %127 = vector.broadcast %126 : vector<1x128xf32> to vector<2x128xf32>
    %128 = arith.addf %124, %127 : vector<2x128xf32>
    %129 = vector.extract_strided_slice %128 {offsets = [0, 0], sizes = [2, 96], strides = [1, 1]} : vector<2x128xf32> to vector<2x96xf32>
    %130 = arith.negf %129 : vector<2x96xf32>
    %131 = math.exp %130 : vector<2x96xf32>
    %cst_63 = arith.constant 1.000000e+00 : f32
    %132 = vector.broadcast %cst_63 : f32 to vector<2x96xf32>
    %133 = arith.addf %132, %131 : vector<2x96xf32>
    %134 = arith.divf %132, %133 : vector<2x96xf32>
    %135 = vector.extract_strided_slice %134 {offsets = [0, 0], sizes = [2, 32], strides = [1, 1]} : vector<2x96xf32> to vector<2x32xf32>
    %136 = vector.extract_strided_slice %134 {offsets = [0, 32], sizes = [2, 32], strides = [1, 1]} : vector<2x96xf32> to vector<2x32xf32>
    %137 = vector.extract_strided_slice %134 {offsets = [0, 64], sizes = [2, 32], strides = [1, 1]} : vector<2x96xf32> to vector<2x32xf32>
    %138 = vector.extract_strided_slice %128 {offsets = [0, 96], sizes = [2, 32], strides = [1, 1]} : vector<2x128xf32> to vector<2x32xf32>
    %cst_64 = arith.constant 0.000000e+00 : f32
    %139 = vector.broadcast %cst_64 : f32 to vector<2x32xf32>
    %140 = arith.maximumf %138, %139 : vector<2x32xf32>
    %141 = arith.mulf %136, %112 : vector<2x32xf32>
    %142 = arith.mulf %135, %140 : vector<2x32xf32>
    %143 = arith.addf %141, %142 : vector<2x32xf32>
    %cst_65 = arith.constant 0.000000e+00 : f32
    %144 = vector.broadcast %cst_65 : f32 to vector<2x32xf32>
    %145 = arith.maximumf %143, %144 : vector<2x32xf32>
    %146 = arith.mulf %137, %145 : vector<2x32xf32>
    %147 = tpu.concatenate %146, %146 in 1 : vector<2x32xf32>, vector<2x32xf32> -> vector<2x64xf32>
    %c1_66 = arith.constant 1 : index
    %c0_67 = arith.constant 0 : index
    %c0_68 = arith.constant 0 : index
    %148 = vector.load %arg2[%c1_66, %c0_67, %c0_68] : memref<2x64x128xf32, #tpu.memory_space<vmem>>, vector<1x64x128xf32>
    %149 = vector.shape_cast %148 : vector<1x64x128xf32> to vector<64x128xf32>
    %cst_69 = arith.constant dense<0.000000e+00> : vector<2x128xf32>
    %150 = tpu.matmul %147, %149, %cst_69 {dimension_numbers = #tpu.dot_dimension_numbers<[1], [0], [0], [1], [0, 0, 1, 1], [], []>} : vector<2x64xf32>, vector<64x128xf32>, vector<2x128xf32> -> vector<2x128xf32>
    %c1_70 = arith.constant 1 : index
    %c0_71 = arith.constant 0 : index
    %c0_72 = arith.constant 0 : index
    %151 = vector.load %arg3[%c1_70, %c0_71, %c0_72] : memref<2x1x128xf32, #tpu.memory_space<vmem>>, vector<1x1x128xf32>
    %152 = vector.shape_cast %151 : vector<1x1x128xf32> to vector<1x128xf32>
    %153 = vector.broadcast %152 : vector<1x128xf32> to vector<2x128xf32>
    %154 = arith.addf %150, %153 : vector<2x128xf32>
    %155 = vector.extract_strided_slice %154 {offsets = [0, 0], sizes = [2, 96], strides = [1, 1]} : vector<2x128xf32> to vector<2x96xf32>
    %156 = arith.negf %155 : vector<2x96xf32>
    %157 = math.exp %156 : vector<2x96xf32>
    %cst_73 = arith.constant 1.000000e+00 : f32
    %158 = vector.broadcast %cst_73 : f32 to vector<2x96xf32>
    %159 = arith.addf %158, %157 : vector<2x96xf32>
    %160 = arith.divf %158, %159 : vector<2x96xf32>
    %161 = vector.extract_strided_slice %160 {offsets = [0, 0], sizes = [2, 32], strides = [1, 1]} : vector<2x96xf32> to vector<2x32xf32>
    %162 = vector.extract_strided_slice %160 {offsets = [0, 32], sizes = [2, 32], strides = [1, 1]} : vector<2x96xf32> to vector<2x32xf32>
    %163 = vector.extract_strided_slice %160 {offsets = [0, 64], sizes = [2, 32], strides = [1, 1]} : vector<2x96xf32> to vector<2x32xf32>
    %164 = vector.extract_strided_slice %154 {offsets = [0, 96], sizes = [2, 32], strides = [1, 1]} : vector<2x128xf32> to vector<2x32xf32>
    %cst_74 = arith.constant 0.000000e+00 : f32
    %165 = vector.broadcast %cst_74 : f32 to vector<2x32xf32>
    %166 = arith.maximumf %164, %165 : vector<2x32xf32>
    %167 = arith.mulf %162, %143 : vector<2x32xf32>
    %168 = arith.mulf %161, %166 : vector<2x32xf32>
    %169 = arith.addf %167, %168 : vector<2x32xf32>
    %cst_75 = arith.constant 0.000000e+00 : f32
    %170 = vector.broadcast %cst_75 : f32 to vector<2x32xf32>
    %171 = arith.maximumf %169, %170 : vector<2x32xf32>
    %172 = arith.mulf %163, %171 : vector<2x32xf32>
    %c2_76 = arith.constant 2 : index
    %c0_77 = arith.constant 0 : index
    %c0_78 = arith.constant 0 : index
    %173 = vector.load %arg4[%c2_76, %c0_77, %c0_78] : memref<8x2x32xf32, #tpu.memory_space<vmem>>, vector<1x2x32xf32>
    %174 = vector.shape_cast %173 : vector<1x2x32xf32> to vector<2x32xf32>
    %175 = vector.shape_cast %172 : vector<2x32xf32> to vector<1x2x32xf32>
    tpu.vector_store %arg4[%c2_76, %c0_77, %c0_78], %175 {strides = array<i32>} : memref<8x2x32xf32, #tpu.memory_space<vmem>>, vector<1x2x32xf32>,
    %c3 = arith.constant 3 : index
    %c0_79 = arith.constant 0 : index
    %c0_80 = arith.constant 0 : index
    %176 = vector.load %arg1[%c3, %c0_79, %c0_80] : memref<8x2x32xf32, #tpu.memory_space<vmem>>, vector<1x2x32xf32>
    %177 = vector.shape_cast %176 : vector<1x2x32xf32> to vector<2x32xf32>
    %178 = tpu.concatenate %177, %172 in 1 : vector<2x32xf32>, vector<2x32xf32> -> vector<2x64xf32>
    %c0_81 = arith.constant 0 : index
    %c0_82 = arith.constant 0 : index
    %c0_83 = arith.constant 0 : index
    %179 = vector.load %arg2[%c0_81, %c0_82, %c0_83] : memref<2x64x128xf32, #tpu.memory_space<vmem>>, vector<1x64x128xf32>
    %180 = vector.shape_cast %179 : vector<1x64x128xf32> to vector<64x128xf32>
    %cst_84 = arith.constant dense<0.000000e+00> : vector<2x128xf32>
    %181 = tpu.matmul %178, %180, %cst_84 {dimension_numbers = #tpu.dot_dimension_numbers<[1], [0], [0], [1], [0, 0, 1, 1], [], []>} : vector<2x64xf32>, vector<64x128xf32>, vector<2x128xf32> -> vector<2x128xf32>
    %c0_85 = arith.constant 0 : index
    %c0_86 = arith.constant 0 : index
    %c0_87 = arith.constant 0 : index
    %182 = vector.load %arg3[%c0_85, %c0_86, %c0_87] : memref<2x1x128xf32, #tpu.memory_space<vmem>>, vector<1x1x128xf32>
    %183 = vector.shape_cast %182 : vector<1x1x128xf32> to vector<1x128xf32>
    %184 = vector.broadcast %183 : vector<1x128xf32> to vector<2x128xf32>
    %185 = arith.addf %181, %184 : vector<2x128xf32>
    %186 = vector.extract_strided_slice %185 {offsets = [0, 0], sizes = [2, 96], strides = [1, 1]} : vector<2x128xf32> to vector<2x96xf32>
    %187 = arith.negf %186 : vector<2x96xf32>
    %188 = math.exp %187 : vector<2x96xf32>
    %cst_88 = arith.constant 1.000000e+00 : f32
    %189 = vector.broadcast %cst_88 : f32 to vector<2x96xf32>
    %190 = arith.addf %189, %188 : vector<2x96xf32>
    %191 = arith.divf %189, %190 : vector<2x96xf32>
    %192 = vector.extract_strided_slice %191 {offsets = [0, 0], sizes = [2, 32], strides = [1, 1]} : vector<2x96xf32> to vector<2x32xf32>
    %193 = vector.extract_strided_slice %191 {offsets = [0, 32], sizes = [2, 32], strides = [1, 1]} : vector<2x96xf32> to vector<2x32xf32>
    %194 = vector.extract_strided_slice %191 {offsets = [0, 64], sizes = [2, 32], strides = [1, 1]} : vector<2x96xf32> to vector<2x32xf32>
    %195 = vector.extract_strided_slice %185 {offsets = [0, 96], sizes = [2, 32], strides = [1, 1]} : vector<2x128xf32> to vector<2x32xf32>
    %cst_89 = arith.constant 0.000000e+00 : f32
    %196 = vector.broadcast %cst_89 : f32 to vector<2x32xf32>
    %197 = arith.maximumf %195, %196 : vector<2x32xf32>
    %198 = arith.mulf %193, %169 : vector<2x32xf32>
    %199 = arith.mulf %192, %197 : vector<2x32xf32>
    %200 = arith.addf %198, %199 : vector<2x32xf32>
    %cst_90 = arith.constant 0.000000e+00 : f32
    %201 = vector.broadcast %cst_90 : f32 to vector<2x32xf32>
    %202 = arith.maximumf %200, %201 : vector<2x32xf32>
    %203 = arith.mulf %194, %202 : vector<2x32xf32>
    %204 = tpu.concatenate %203, %203 in 1 : vector<2x32xf32>, vector<2x32xf32> -> vector<2x64xf32>
    %c1_91 = arith.constant 1 : index
    %c0_92 = arith.constant 0 : index
    %c0_93 = arith.constant 0 : index
    %205 = vector.load %arg2[%c1_91, %c0_92, %c0_93] : memref<2x64x128xf32, #tpu.memory_space<vmem>>, vector<1x64x128xf32>
    %206 = vector.shape_cast %205 : vector<1x64x128xf32> to vector<64x128xf32>
    %cst_94 = arith.constant dense<0.000000e+00> : vector<2x128xf32>
    %207 = tpu.matmul %204, %206, %cst_94 {dimension_numbers = #tpu.dot_dimension_numbers<[1], [0], [0], [1], [0, 0, 1, 1], [], []>} : vector<2x64xf32>, vector<64x128xf32>, vector<2x128xf32> -> vector<2x128xf32>
    %c1_95 = arith.constant 1 : index
    %c0_96 = arith.constant 0 : index
    %c0_97 = arith.constant 0 : index
    %208 = vector.load %arg3[%c1_95, %c0_96, %c0_97] : memref<2x1x128xf32, #tpu.memory_space<vmem>>, vector<1x1x128xf32>
    %209 = vector.shape_cast %208 : vector<1x1x128xf32> to vector<1x128xf32>
    %210 = vector.broadcast %209 : vector<1x128xf32> to vector<2x128xf32>
    %211 = arith.addf %207, %210 : vector<2x128xf32>
    %212 = vector.extract_strided_slice %211 {offsets = [0, 0], sizes = [2, 96], strides = [1, 1]} : vector<2x128xf32> to vector<2x96xf32>
    %213 = arith.negf %212 : vector<2x96xf32>
    %214 = math.exp %213 : vector<2x96xf32>
    %cst_98 = arith.constant 1.000000e+00 : f32
    %215 = vector.broadcast %cst_98 : f32 to vector<2x96xf32>
    %216 = arith.addf %215, %214 : vector<2x96xf32>
    %217 = arith.divf %215, %216 : vector<2x96xf32>
    %218 = vector.extract_strided_slice %217 {offsets = [0, 0], sizes = [2, 32], strides = [1, 1]} : vector<2x96xf32> to vector<2x32xf32>
    %219 = vector.extract_strided_slice %217 {offsets = [0, 32], sizes = [2, 32], strides = [1, 1]} : vector<2x96xf32> to vector<2x32xf32>
    %220 = vector.extract_strided_slice %217 {offsets = [0, 64], sizes = [2, 32], strides = [1, 1]} : vector<2x96xf32> to vector<2x32xf32>
    %221 = vector.extract_strided_slice %211 {offsets = [0, 96], sizes = [2, 32], strides = [1, 1]} : vector<2x128xf32> to vector<2x32xf32>
    %cst_99 = arith.constant 0.000000e+00 : f32
    %222 = vector.broadcast %cst_99 : f32 to vector<2x32xf32>
    %223 = arith.maximumf %221, %222 : vector<2x32xf32>
    %224 = arith.mulf %219, %200 : vector<2x32xf32>
    %225 = arith.mulf %218, %223 : vector<2x32xf32>
    %226 = arith.addf %224, %225 : vector<2x32xf32>
    %cst_100 = arith.constant 0.000000e+00 : f32
    %227 = vector.broadcast %cst_100 : f32 to vector<2x32xf32>
    %228 = arith.maximumf %226, %227 : vector<2x32xf32>
    %229 = arith.mulf %220, %228 : vector<2x32xf32>
    %c3_101 = arith.constant 3 : index
    %c0_102 = arith.constant 0 : index
    %c0_103 = arith.constant 0 : index
    %230 = vector.load %arg4[%c3_101, %c0_102, %c0_103] : memref<8x2x32xf32, #tpu.memory_space<vmem>>, vector<1x2x32xf32>
    %231 = vector.shape_cast %230 : vector<1x2x32xf32> to vector<2x32xf32>
    %232 = vector.shape_cast %229 : vector<2x32xf32> to vector<1x2x32xf32>
    tpu.vector_store %arg4[%c3_101, %c0_102, %c0_103], %232 {strides = array<i32>} : memref<8x2x32xf32, #tpu.memory_space<vmem>>, vector<1x2x32xf32>,
    %c4 = arith.constant 4 : index
    %c0_104 = arith.constant 0 : index
    %c0_105 = arith.constant 0 : index
    %233 = vector.load %arg1[%c4, %c0_104, %c0_105] : memref<8x2x32xf32, #tpu.memory_space<vmem>>, vector<1x2x32xf32>
    %234 = vector.shape_cast %233 : vector<1x2x32xf32> to vector<2x32xf32>
    %235 = tpu.concatenate %234, %229 in 1 : vector<2x32xf32>, vector<2x32xf32> -> vector<2x64xf32>
    %c0_106 = arith.constant 0 : index
    %c0_107 = arith.constant 0 : index
    %c0_108 = arith.constant 0 : index
    %236 = vector.load %arg2[%c0_106, %c0_107, %c0_108] : memref<2x64x128xf32, #tpu.memory_space<vmem>>, vector<1x64x128xf32>
    %237 = vector.shape_cast %236 : vector<1x64x128xf32> to vector<64x128xf32>
    %cst_109 = arith.constant dense<0.000000e+00> : vector<2x128xf32>
    %238 = tpu.matmul %235, %237, %cst_109 {dimension_numbers = #tpu.dot_dimension_numbers<[1], [0], [0], [1], [0, 0, 1, 1], [], []>} : vector<2x64xf32>, vector<64x128xf32>, vector<2x128xf32> -> vector<2x128xf32>
    %c0_110 = arith.constant 0 : index
    %c0_111 = arith.constant 0 : index
    %c0_112 = arith.constant 0 : index
    %239 = vector.load %arg3[%c0_110, %c0_111, %c0_112] : memref<2x1x128xf32, #tpu.memory_space<vmem>>, vector<1x1x128xf32>
    %240 = vector.shape_cast %239 : vector<1x1x128xf32> to vector<1x128xf32>
    %241 = vector.broadcast %240 : vector<1x128xf32> to vector<2x128xf32>
    %242 = arith.addf %238, %241 : vector<2x128xf32>
    %243 = vector.extract_strided_slice %242 {offsets = [0, 0], sizes = [2, 96], strides = [1, 1]} : vector<2x128xf32> to vector<2x96xf32>
    %244 = arith.negf %243 : vector<2x96xf32>
    %245 = math.exp %244 : vector<2x96xf32>
    %cst_113 = arith.constant 1.000000e+00 : f32
    %246 = vector.broadcast %cst_113 : f32 to vector<2x96xf32>
    %247 = arith.addf %246, %245 : vector<2x96xf32>
    %248 = arith.divf %246, %247 : vector<2x96xf32>
    %249 = vector.extract_strided_slice %248 {offsets = [0, 0], sizes = [2, 32], strides = [1, 1]} : vector<2x96xf32> to vector<2x32xf32>
    %250 = vector.extract_strided_slice %248 {offsets = [0, 32], sizes = [2, 32], strides = [1, 1]} : vector<2x96xf32> to vector<2x32xf32>
    %251 = vector.extract_strided_slice %248 {offsets = [0, 64], sizes = [2, 32], strides = [1, 1]} : vector<2x96xf32> to vector<2x32xf32>
    %252 = vector.extract_strided_slice %242 {offsets = [0, 96], sizes = [2, 32], strides = [1, 1]} : vector<2x128xf32> to vector<2x32xf32>
    %cst_114 = arith.constant 0.000000e+00 : f32
    %253 = vector.broadcast %cst_114 : f32 to vector<2x32xf32>
    %254 = arith.maximumf %252, %253 : vector<2x32xf32>
    %255 = arith.mulf %250, %226 : vector<2x32xf32>
    %256 = arith.mulf %249, %254 : vector<2x32xf32>
    %257 = arith.addf %255, %256 : vector<2x32xf32>
    %cst_115 = arith.constant 0.000000e+00 : f32
    %258 = vector.broadcast %cst_115 : f32 to vector<2x32xf32>
    %259 = arith.maximumf %257, %258 : vector<2x32xf32>
    %260 = arith.mulf %251, %259 : vector<2x32xf32>
    %261 = tpu.concatenate %260, %260 in 1 : vector<2x32xf32>, vector<2x32xf32> -> vector<2x64xf32>
    %c1_116 = arith.constant 1 : index
    %c0_117 = arith.constant 0 : index
    %c0_118 = arith.constant 0 : index
    %262 = vector.load %arg2[%c1_116, %c0_117, %c0_118] : memref<2x64x128xf32, #tpu.memory_space<vmem>>, vector<1x64x128xf32>
    %263 = vector.shape_cast %262 : vector<1x64x128xf32> to vector<64x128xf32>
    %cst_119 = arith.constant dense<0.000000e+00> : vector<2x128xf32>
    %264 = tpu.matmul %261, %263, %cst_119 {dimension_numbers = #tpu.dot_dimension_numbers<[1], [0], [0], [1], [0, 0, 1, 1], [], []>} : vector<2x64xf32>, vector<64x128xf32>, vector<2x128xf32> -> vector<2x128xf32>
    %c1_120 = arith.constant 1 : index
    %c0_121 = arith.constant 0 : index
    %c0_122 = arith.constant 0 : index
    %265 = vector.load %arg3[%c1_120, %c0_121, %c0_122] : memref<2x1x128xf32, #tpu.memory_space<vmem>>, vector<1x1x128xf32>
    %266 = vector.shape_cast %265 : vector<1x1x128xf32> to vector<1x128xf32>
    %267 = vector.broadcast %266 : vector<1x128xf32> to vector<2x128xf32>
    %268 = arith.addf %264, %267 : vector<2x128xf32>
    %269 = vector.extract_strided_slice %268 {offsets = [0, 0], sizes = [2, 96], strides = [1, 1]} : vector<2x128xf32> to vector<2x96xf32>
    %270 = arith.negf %269 : vector<2x96xf32>
    %271 = math.exp %270 : vector<2x96xf32>
    %cst_123 = arith.constant 1.000000e+00 : f32
    %272 = vector.broadcast %cst_123 : f32 to vector<2x96xf32>
    %273 = arith.addf %272, %271 : vector<2x96xf32>
    %274 = arith.divf %272, %273 : vector<2x96xf32>
    %275 = vector.extract_strided_slice %274 {offsets = [0, 0], sizes = [2, 32], strides = [1, 1]} : vector<2x96xf32> to vector<2x32xf32>
    %276 = vector.extract_strided_slice %274 {offsets = [0, 32], sizes = [2, 32], strides = [1, 1]} : vector<2x96xf32> to vector<2x32xf32>
    %277 = vector.extract_strided_slice %274 {offsets = [0, 64], sizes = [2, 32], strides = [1, 1]} : vector<2x96xf32> to vector<2x32xf32>
    %278 = vector.extract_strided_slice %268 {offsets = [0, 96], sizes = [2, 32], strides = [1, 1]} : vector<2x128xf32> to vector<2x32xf32>
    %cst_124 = arith.constant 0.000000e+00 : f32
    %279 = vector.broadcast %cst_124 : f32 to vector<2x32xf32>
    %280 = arith.maximumf %278, %279 : vector<2x32xf32>
    %281 = arith.mulf %276, %257 : vector<2x32xf32>
    %282 = arith.mulf %275, %280 : vector<2x32xf32>
    %283 = arith.addf %281, %282 : vector<2x32xf32>
    %cst_125 = arith.constant 0.000000e+00 : f32
    %284 = vector.broadcast %cst_125 : f32 to vector<2x32xf32>
    %285 = arith.maximumf %283, %284 : vector<2x32xf32>
    %286 = arith.mulf %277, %285 : vector<2x32xf32>
    %c4_126 = arith.constant 4 : index
    %c0_127 = arith.constant 0 : index
    %c0_128 = arith.constant 0 : index
    %287 = vector.load %arg4[%c4_126, %c0_127, %c0_128] : memref<8x2x32xf32, #tpu.memory_space<vmem>>, vector<1x2x32xf32>
    %288 = vector.shape_cast %287 : vector<1x2x32xf32> to vector<2x32xf32>
    %289 = vector.shape_cast %286 : vector<2x32xf32> to vector<1x2x32xf32>
    tpu.vector_store %arg4[%c4_126, %c0_127, %c0_128], %289 {strides = array<i32>} : memref<8x2x32xf32, #tpu.memory_space<vmem>>, vector<1x2x32xf32>,
    %c5 = arith.constant 5 : index
    %c0_129 = arith.constant 0 : index
    %c0_130 = arith.constant 0 : index
    %290 = vector.load %arg1[%c5, %c0_129, %c0_130] : memref<8x2x32xf32, #tpu.memory_space<vmem>>, vector<1x2x32xf32>
    %291 = vector.shape_cast %290 : vector<1x2x32xf32> to vector<2x32xf32>
    %292 = tpu.concatenate %291, %286 in 1 : vector<2x32xf32>, vector<2x32xf32> -> vector<2x64xf32>
    %c0_131 = arith.constant 0 : index
    %c0_132 = arith.constant 0 : index
    %c0_133 = arith.constant 0 : index
    %293 = vector.load %arg2[%c0_131, %c0_132, %c0_133] : memref<2x64x128xf32, #tpu.memory_space<vmem>>, vector<1x64x128xf32>
    %294 = vector.shape_cast %293 : vector<1x64x128xf32> to vector<64x128xf32>
    %cst_134 = arith.constant dense<0.000000e+00> : vector<2x128xf32>
    %295 = tpu.matmul %292, %294, %cst_134 {dimension_numbers = #tpu.dot_dimension_numbers<[1], [0], [0], [1], [0, 0, 1, 1], [], []>} : vector<2x64xf32>, vector<64x128xf32>, vector<2x128xf32> -> vector<2x128xf32>
    %c0_135 = arith.constant 0 : index
    %c0_136 = arith.constant 0 : index
    %c0_137 = arith.constant 0 : index
    %296 = vector.load %arg3[%c0_135, %c0_136, %c0_137] : memref<2x1x128xf32, #tpu.memory_space<vmem>>, vector<1x1x128xf32>
    %297 = vector.shape_cast %296 : vector<1x1x128xf32> to vector<1x128xf32>
    %298 = vector.broadcast %297 : vector<1x128xf32> to vector<2x128xf32>
    %299 = arith.addf %295, %298 : vector<2x128xf32>
    %300 = vector.extract_strided_slice %299 {offsets = [0, 0], sizes = [2, 96], strides = [1, 1]} : vector<2x128xf32> to vector<2x96xf32>
    %301 = arith.negf %300 : vector<2x96xf32>
    %302 = math.exp %301 : vector<2x96xf32>
    %cst_138 = arith.constant 1.000000e+00 : f32
    %303 = vector.broadcast %cst_138 : f32 to vector<2x96xf32>
    %304 = arith.addf %303, %302 : vector<2x96xf32>
    %305 = arith.divf %303, %304 : vector<2x96xf32>
    %306 = vector.extract_strided_slice %305 {offsets = [0, 0], sizes = [2, 32], strides = [1, 1]} : vector<2x96xf32> to vector<2x32xf32>
    %307 = vector.extract_strided_slice %305 {offsets = [0, 32], sizes = [2, 32], strides = [1, 1]} : vector<2x96xf32> to vector<2x32xf32>
    %308 = vector.extract_strided_slice %305 {offsets = [0, 64], sizes = [2, 32], strides = [1, 1]} : vector<2x96xf32> to vector<2x32xf32>
    %309 = vector.extract_strided_slice %299 {offsets = [0, 96], sizes = [2, 32], strides = [1, 1]} : vector<2x128xf32> to vector<2x32xf32>
    %cst_139 = arith.constant 0.000000e+00 : f32
    %310 = vector.broadcast %cst_139 : f32 to vector<2x32xf32>
    %311 = arith.maximumf %309, %310 : vector<2x32xf32>
    %312 = arith.mulf %307, %283 : vector<2x32xf32>
    %313 = arith.mulf %306, %311 : vector<2x32xf32>
    %314 = arith.addf %312, %313 : vector<2x32xf32>
    %cst_140 = arith.constant 0.000000e+00 : f32
    %315 = vector.broadcast %cst_140 : f32 to vector<2x32xf32>
    %316 = arith.maximumf %314, %315 : vector<2x32xf32>
    %317 = arith.mulf %308, %316 : vector<2x32xf32>
    %318 = tpu.concatenate %317, %317 in 1 : vector<2x32xf32>, vector<2x32xf32> -> vector<2x64xf32>
    %c1_141 = arith.constant 1 : index
    %c0_142 = arith.constant 0 : index
    %c0_143 = arith.constant 0 : index
    %319 = vector.load %arg2[%c1_141, %c0_142, %c0_143] : memref<2x64x128xf32, #tpu.memory_space<vmem>>, vector<1x64x128xf32>
    %320 = vector.shape_cast %319 : vector<1x64x128xf32> to vector<64x128xf32>
    %cst_144 = arith.constant dense<0.000000e+00> : vector<2x128xf32>
    %321 = tpu.matmul %318, %320, %cst_144 {dimension_numbers = #tpu.dot_dimension_numbers<[1], [0], [0], [1], [0, 0, 1, 1], [], []>} : vector<2x64xf32>, vector<64x128xf32>, vector<2x128xf32> -> vector<2x128xf32>
    %c1_145 = arith.constant 1 : index
    %c0_146 = arith.constant 0 : index
    %c0_147 = arith.constant 0 : index
    %322 = vector.load %arg3[%c1_145, %c0_146, %c0_147] : memref<2x1x128xf32, #tpu.memory_space<vmem>>, vector<1x1x128xf32>
    %323 = vector.shape_cast %322 : vector<1x1x128xf32> to vector<1x128xf32>
    %324 = vector.broadcast %323 : vector<1x128xf32> to vector<2x128xf32>
    %325 = arith.addf %321, %324 : vector<2x128xf32>
    %326 = vector.extract_strided_slice %325 {offsets = [0, 0], sizes = [2, 96], strides = [1, 1]} : vector<2x128xf32> to vector<2x96xf32>
    %327 = arith.negf %326 : vector<2x96xf32>
    %328 = math.exp %327 : vector<2x96xf32>
    %cst_148 = arith.constant 1.000000e+00 : f32
    %329 = vector.broadcast %cst_148 : f32 to vector<2x96xf32>
    %330 = arith.addf %329, %328 : vector<2x96xf32>
    %331 = arith.divf %329, %330 : vector<2x96xf32>
    %332 = vector.extract_strided_slice %331 {offsets = [0, 0], sizes = [2, 32], strides = [1, 1]} : vector<2x96xf32> to vector<2x32xf32>
    %333 = vector.extract_strided_slice %331 {offsets = [0, 32], sizes = [2, 32], strides = [1, 1]} : vector<2x96xf32> to vector<2x32xf32>
    %334 = vector.extract_strided_slice %331 {offsets = [0, 64], sizes = [2, 32], strides = [1, 1]} : vector<2x96xf32> to vector<2x32xf32>
    %335 = vector.extract_strided_slice %325 {offsets = [0, 96], sizes = [2, 32], strides = [1, 1]} : vector<2x128xf32> to vector<2x32xf32>
    %cst_149 = arith.constant 0.000000e+00 : f32
    %336 = vector.broadcast %cst_149 : f32 to vector<2x32xf32>
    %337 = arith.maximumf %335, %336 : vector<2x32xf32>
    %338 = arith.mulf %333, %314 : vector<2x32xf32>
    %339 = arith.mulf %332, %337 : vector<2x32xf32>
    %340 = arith.addf %338, %339 : vector<2x32xf32>
    %cst_150 = arith.constant 0.000000e+00 : f32
    %341 = vector.broadcast %cst_150 : f32 to vector<2x32xf32>
    %342 = arith.maximumf %340, %341 : vector<2x32xf32>
    %343 = arith.mulf %334, %342 : vector<2x32xf32>
    %c5_151 = arith.constant 5 : index
    %c0_152 = arith.constant 0 : index
    %c0_153 = arith.constant 0 : index
    %344 = vector.load %arg4[%c5_151, %c0_152, %c0_153] : memref<8x2x32xf32, #tpu.memory_space<vmem>>, vector<1x2x32xf32>
    %345 = vector.shape_cast %344 : vector<1x2x32xf32> to vector<2x32xf32>
    %346 = vector.shape_cast %343 : vector<2x32xf32> to vector<1x2x32xf32>
    tpu.vector_store %arg4[%c5_151, %c0_152, %c0_153], %346 {strides = array<i32>} : memref<8x2x32xf32, #tpu.memory_space<vmem>>, vector<1x2x32xf32>,
    %c6 = arith.constant 6 : index
    %c0_154 = arith.constant 0 : index
    %c0_155 = arith.constant 0 : index
    %347 = vector.load %arg1[%c6, %c0_154, %c0_155] : memref<8x2x32xf32, #tpu.memory_space<vmem>>, vector<1x2x32xf32>
    %348 = vector.shape_cast %347 : vector<1x2x32xf32> to vector<2x32xf32>
    %349 = tpu.concatenate %348, %343 in 1 : vector<2x32xf32>, vector<2x32xf32> -> vector<2x64xf32>
    %c0_156 = arith.constant 0 : index
    %c0_157 = arith.constant 0 : index
    %c0_158 = arith.constant 0 : index
    %350 = vector.load %arg2[%c0_156, %c0_157, %c0_158] : memref<2x64x128xf32, #tpu.memory_space<vmem>>, vector<1x64x128xf32>
    %351 = vector.shape_cast %350 : vector<1x64x128xf32> to vector<64x128xf32>
    %cst_159 = arith.constant dense<0.000000e+00> : vector<2x128xf32>
    %352 = tpu.matmul %349, %351, %cst_159 {dimension_numbers = #tpu.dot_dimension_numbers<[1], [0], [0], [1], [0, 0, 1, 1], [], []>} : vector<2x64xf32>, vector<64x128xf32>, vector<2x128xf32> -> vector<2x128xf32>
    %c0_160 = arith.constant 0 : index
    %c0_161 = arith.constant 0 : index
    %c0_162 = arith.constant 0 : index
    %353 = vector.load %arg3[%c0_160, %c0_161, %c0_162] : memref<2x1x128xf32, #tpu.memory_space<vmem>>, vector<1x1x128xf32>
    %354 = vector.shape_cast %353 : vector<1x1x128xf32> to vector<1x128xf32>
    %355 = vector.broadcast %354 : vector<1x128xf32> to vector<2x128xf32>
    %356 = arith.addf %352, %355 : vector<2x128xf32>
    %357 = vector.extract_strided_slice %356 {offsets = [0, 0], sizes = [2, 96], strides = [1, 1]} : vector<2x128xf32> to vector<2x96xf32>
    %358 = arith.negf %357 : vector<2x96xf32>
    %359 = math.exp %358 : vector<2x96xf32>
    %cst_163 = arith.constant 1.000000e+00 : f32
    %360 = vector.broadcast %cst_163 : f32 to vector<2x96xf32>
    %361 = arith.addf %360, %359 : vector<2x96xf32>
    %362 = arith.divf %360, %361 : vector<2x96xf32>
    %363 = vector.extract_strided_slice %362 {offsets = [0, 0], sizes = [2, 32], strides = [1, 1]} : vector<2x96xf32> to vector<2x32xf32>
    %364 = vector.extract_strided_slice %362 {offsets = [0, 32], sizes = [2, 32], strides = [1, 1]} : vector<2x96xf32> to vector<2x32xf32>
    %365 = vector.extract_strided_slice %362 {offsets = [0, 64], sizes = [2, 32], strides = [1, 1]} : vector<2x96xf32> to vector<2x32xf32>
    %366 = vector.extract_strided_slice %356 {offsets = [0, 96], sizes = [2, 32], strides = [1, 1]} : vector<2x128xf32> to vector<2x32xf32>
    %cst_164 = arith.constant 0.000000e+00 : f32
    %367 = vector.broadcast %cst_164 : f32 to vector<2x32xf32>
    %368 = arith.maximumf %366, %367 : vector<2x32xf32>
    %369 = arith.mulf %364, %340 : vector<2x32xf32>
    %370 = arith.mulf %363, %368 : vector<2x32xf32>
    %371 = arith.addf %369, %370 : vector<2x32xf32>
    %cst_165 = arith.constant 0.000000e+00 : f32
    %372 = vector.broadcast %cst_165 : f32 to vector<2x32xf32>
    %373 = arith.maximumf %371, %372 : vector<2x32xf32>
    %374 = arith.mulf %365, %373 : vector<2x32xf32>
    %375 = tpu.concatenate %374, %374 in 1 : vector<2x32xf32>, vector<2x32xf32> -> vector<2x64xf32>
    %c1_166 = arith.constant 1 : index
    %c0_167 = arith.constant 0 : index
    %c0_168 = arith.constant 0 : index
    %376 = vector.load %arg2[%c1_166, %c0_167, %c0_168] : memref<2x64x128xf32, #tpu.memory_space<vmem>>, vector<1x64x128xf32>
    %377 = vector.shape_cast %376 : vector<1x64x128xf32> to vector<64x128xf32>
    %cst_169 = arith.constant dense<0.000000e+00> : vector<2x128xf32>
    %378 = tpu.matmul %375, %377, %cst_169 {dimension_numbers = #tpu.dot_dimension_numbers<[1], [0], [0], [1], [0, 0, 1, 1], [], []>} : vector<2x64xf32>, vector<64x128xf32>, vector<2x128xf32> -> vector<2x128xf32>
    %c1_170 = arith.constant 1 : index
    %c0_171 = arith.constant 0 : index
    %c0_172 = arith.constant 0 : index
    %379 = vector.load %arg3[%c1_170, %c0_171, %c0_172] : memref<2x1x128xf32, #tpu.memory_space<vmem>>, vector<1x1x128xf32>
    %380 = vector.shape_cast %379 : vector<1x1x128xf32> to vector<1x128xf32>
    %381 = vector.broadcast %380 : vector<1x128xf32> to vector<2x128xf32>
    %382 = arith.addf %378, %381 : vector<2x128xf32>
    %383 = vector.extract_strided_slice %382 {offsets = [0, 0], sizes = [2, 96], strides = [1, 1]} : vector<2x128xf32> to vector<2x96xf32>
    %384 = arith.negf %383 : vector<2x96xf32>
    %385 = math.exp %384 : vector<2x96xf32>
    %cst_173 = arith.constant 1.000000e+00 : f32
    %386 = vector.broadcast %cst_173 : f32 to vector<2x96xf32>
    %387 = arith.addf %386, %385 : vector<2x96xf32>
    %388 = arith.divf %386, %387 : vector<2x96xf32>
    %389 = vector.extract_strided_slice %388 {offsets = [0, 0], sizes = [2, 32], strides = [1, 1]} : vector<2x96xf32> to vector<2x32xf32>
    %390 = vector.extract_strided_slice %388 {offsets = [0, 32], sizes = [2, 32], strides = [1, 1]} : vector<2x96xf32> to vector<2x32xf32>
    %391 = vector.extract_strided_slice %388 {offsets = [0, 64], sizes = [2, 32], strides = [1, 1]} : vector<2x96xf32> to vector<2x32xf32>
    %392 = vector.extract_strided_slice %382 {offsets = [0, 96], sizes = [2, 32], strides = [1, 1]} : vector<2x128xf32> to vector<2x32xf32>
    %cst_174 = arith.constant 0.000000e+00 : f32
    %393 = vector.broadcast %cst_174 : f32 to vector<2x32xf32>
    %394 = arith.maximumf %392, %393 : vector<2x32xf32>
    %395 = arith.mulf %390, %371 : vector<2x32xf32>
    %396 = arith.mulf %389, %394 : vector<2x32xf32>
    %397 = arith.addf %395, %396 : vector<2x32xf32>
    %cst_175 = arith.constant 0.000000e+00 : f32
    %398 = vector.broadcast %cst_175 : f32 to vector<2x32xf32>
    %399 = arith.maximumf %397, %398 : vector<2x32xf32>
    %400 = arith.mulf %391, %399 : vector<2x32xf32>
    %c6_176 = arith.constant 6 : index
    %c0_177 = arith.constant 0 : index
    %c0_178 = arith.constant 0 : index
    %401 = vector.load %arg4[%c6_176, %c0_177, %c0_178] : memref<8x2x32xf32, #tpu.memory_space<vmem>>, vector<1x2x32xf32>
    %402 = vector.shape_cast %401 : vector<1x2x32xf32> to vector<2x32xf32>
    %403 = vector.shape_cast %400 : vector<2x32xf32> to vector<1x2x32xf32>
    tpu.vector_store %arg4[%c6_176, %c0_177, %c0_178], %403 {strides = array<i32>} : memref<8x2x32xf32, #tpu.memory_space<vmem>>, vector<1x2x32xf32>,
    %c7 = arith.constant 7 : index
    %c0_179 = arith.constant 0 : index
    %c0_180 = arith.constant 0 : index
    %404 = vector.load %arg1[%c7, %c0_179, %c0_180] : memref<8x2x32xf32, #tpu.memory_space<vmem>>, vector<1x2x32xf32>
    %405 = vector.shape_cast %404 : vector<1x2x32xf32> to vector<2x32xf32>
    %406 = tpu.concatenate %405, %400 in 1 : vector<2x32xf32>, vector<2x32xf32> -> vector<2x64xf32>
    %c0_181 = arith.constant 0 : index
    %c0_182 = arith.constant 0 : index
    %c0_183 = arith.constant 0 : index
    %407 = vector.load %arg2[%c0_181, %c0_182, %c0_183] : memref<2x64x128xf32, #tpu.memory_space<vmem>>, vector<1x64x128xf32>
    %408 = vector.shape_cast %407 : vector<1x64x128xf32> to vector<64x128xf32>
    %cst_184 = arith.constant dense<0.000000e+00> : vector<2x128xf32>
    %409 = tpu.matmul %406, %408, %cst_184 {dimension_numbers = #tpu.dot_dimension_numbers<[1], [0], [0], [1], [0, 0, 1, 1], [], []>} : vector<2x64xf32>, vector<64x128xf32>, vector<2x128xf32> -> vector<2x128xf32>
    %c0_185 = arith.constant 0 : index
    %c0_186 = arith.constant 0 : index
    %c0_187 = arith.constant 0 : index
    %410 = vector.load %arg3[%c0_185, %c0_186, %c0_187] : memref<2x1x128xf32, #tpu.memory_space<vmem>>, vector<1x1x128xf32>
    %411 = vector.shape_cast %410 : vector<1x1x128xf32> to vector<1x128xf32>
    %412 = vector.broadcast %411 : vector<1x128xf32> to vector<2x128xf32>
    %413 = arith.addf %409, %412 : vector<2x128xf32>
    %414 = vector.extract_strided_slice %413 {offsets = [0, 0], sizes = [2, 96], strides = [1, 1]} : vector<2x128xf32> to vector<2x96xf32>
    %415 = arith.negf %414 : vector<2x96xf32>
    %416 = math.exp %415 : vector<2x96xf32>
    %cst_188 = arith.constant 1.000000e+00 : f32
    %417 = vector.broadcast %cst_188 : f32 to vector<2x96xf32>
    %418 = arith.addf %417, %416 : vector<2x96xf32>
    %419 = arith.divf %417, %418 : vector<2x96xf32>
    %420 = vector.extract_strided_slice %419 {offsets = [0, 0], sizes = [2, 32], strides = [1, 1]} : vector<2x96xf32> to vector<2x32xf32>
    %421 = vector.extract_strided_slice %419 {offsets = [0, 32], sizes = [2, 32], strides = [1, 1]} : vector<2x96xf32> to vector<2x32xf32>
    %422 = vector.extract_strided_slice %419 {offsets = [0, 64], sizes = [2, 32], strides = [1, 1]} : vector<2x96xf32> to vector<2x32xf32>
    %423 = vector.extract_strided_slice %413 {offsets = [0, 96], sizes = [2, 32], strides = [1, 1]} : vector<2x128xf32> to vector<2x32xf32>
    %cst_189 = arith.constant 0.000000e+00 : f32
    %424 = vector.broadcast %cst_189 : f32 to vector<2x32xf32>
    %425 = arith.maximumf %423, %424 : vector<2x32xf32>
    %426 = arith.mulf %421, %397 : vector<2x32xf32>
    %427 = arith.mulf %420, %425 : vector<2x32xf32>
    %428 = arith.addf %426, %427 : vector<2x32xf32>
    %cst_190 = arith.constant 0.000000e+00 : f32
    %429 = vector.broadcast %cst_190 : f32 to vector<2x32xf32>
    %430 = arith.maximumf %428, %429 : vector<2x32xf32>
    %431 = arith.mulf %422, %430 : vector<2x32xf32>
    %432 = tpu.concatenate %431, %431 in 1 : vector<2x32xf32>, vector<2x32xf32> -> vector<2x64xf32>
    %c1_191 = arith.constant 1 : index
    %c0_192 = arith.constant 0 : index
    %c0_193 = arith.constant 0 : index
    %433 = vector.load %arg2[%c1_191, %c0_192, %c0_193] : memref<2x64x128xf32, #tpu.memory_space<vmem>>, vector<1x64x128xf32>
    %434 = vector.shape_cast %433 : vector<1x64x128xf32> to vector<64x128xf32>
    %cst_194 = arith.constant dense<0.000000e+00> : vector<2x128xf32>
    %435 = tpu.matmul %432, %434, %cst_194 {dimension_numbers = #tpu.dot_dimension_numbers<[1], [0], [0], [1], [0, 0, 1, 1], [], []>} : vector<2x64xf32>, vector<64x128xf32>, vector<2x128xf32> -> vector<2x128xf32>
    %c1_195 = arith.constant 1 : index
    %c0_196 = arith.constant 0 : index
    %c0_197 = arith.constant 0 : index
    %436 = vector.load %arg3[%c1_195, %c0_196, %c0_197] : memref<2x1x128xf32, #tpu.memory_space<vmem>>, vector<1x1x128xf32>
    %437 = vector.shape_cast %436 : vector<1x1x128xf32> to vector<1x128xf32>
    %438 = vector.broadcast %437 : vector<1x128xf32> to vector<2x128xf32>
    %439 = arith.addf %435, %438 : vector<2x128xf32>
    %440 = vector.extract_strided_slice %439 {offsets = [0, 0], sizes = [2, 96], strides = [1, 1]} : vector<2x128xf32> to vector<2x96xf32>
    %441 = arith.negf %440 : vector<2x96xf32>
    %442 = math.exp %441 : vector<2x96xf32>
    %cst_198 = arith.constant 1.000000e+00 : f32
    %443 = vector.broadcast %cst_198 : f32 to vector<2x96xf32>
    %444 = arith.addf %443, %442 : vector<2x96xf32>
    %445 = arith.divf %443, %444 : vector<2x96xf32>
    %446 = vector.extract_strided_slice %445 {offsets = [0, 0], sizes = [2, 32], strides = [1, 1]} : vector<2x96xf32> to vector<2x32xf32>
    %447 = vector.extract_strided_slice %445 {offsets = [0, 32], sizes = [2, 32], strides = [1, 1]} : vector<2x96xf32> to vector<2x32xf32>
    %448 = vector.extract_strided_slice %445 {offsets = [0, 64], sizes = [2, 32], strides = [1, 1]} : vector<2x96xf32> to vector<2x32xf32>
    %449 = vector.extract_strided_slice %439 {offsets = [0, 96], sizes = [2, 32], strides = [1, 1]} : vector<2x128xf32> to vector<2x32xf32>
    %cst_199 = arith.constant 0.000000e+00 : f32
    %450 = vector.broadcast %cst_199 : f32 to vector<2x32xf32>
    %451 = arith.maximumf %449, %450 : vector<2x32xf32>
    %452 = arith.mulf %447, %428 : vector<2x32xf32>
    %453 = arith.mulf %446, %451 : vector<2x32xf32>
    %454 = arith.addf %452, %453 : vector<2x32xf32>
    %cst_200 = arith.constant 0.000000e+00 : f32
    %455 = vector.broadcast %cst_200 : f32 to vector<2x32xf32>
    %456 = arith.maximumf %454, %455 : vector<2x32xf32>
    %457 = arith.mulf %448, %456 : vector<2x32xf32>
    %c7_201 = arith.constant 7 : index
    %c0_202 = arith.constant 0 : index
    %c0_203 = arith.constant 0 : index
    %458 = vector.load %arg4[%c7_201, %c0_202, %c0_203] : memref<8x2x32xf32, #tpu.memory_space<vmem>>, vector<1x2x32xf32>
    %459 = vector.shape_cast %458 : vector<1x2x32xf32> to vector<2x32xf32>
    %460 = vector.shape_cast %457 : vector<2x32xf32> to vector<1x2x32xf32>
    tpu.vector_store %arg4[%c7_201, %c0_202, %c0_203], %460 {strides = array<i32>} : memref<8x2x32xf32, #tpu.memory_space<vmem>>, vector<1x2x32xf32>,
    %c0_204 = arith.constant 0 : index
    %c0_205 = arith.constant 0 : index
    %461 = vector.load %arg7[%c0_204, %c0_205] : memref<2x32xf32, #tpu.memory_space<vmem>>, vector<2x32xf32>
    tpu.vector_store %arg7[%c0_204, %c0_205], %457 {strides = array<i32>} : memref<2x32xf32, #tpu.memory_space<vmem>>, vector<2x32xf32>,
    %c0_206 = arith.constant 0 : index
    %c0_207 = arith.constant 0 : index
    %462 = vector.load %arg8[%c0_206, %c0_207] : memref<2x32xf32, #tpu.memory_space<vmem>>, vector<2x32xf32>
    tpu.vector_store %arg8[%c0_206, %c0_207], %454 {strides = array<i32>} : memref<2x32xf32, #tpu.memory_space<vmem>>, vector<2x32xf32>,
    %c0_i32_208 = arith.constant 0 : i32
    %463 = arith.cmpi eq, %arg0, %c0_i32_208 : i32
    %464 = arith.extui %463 : i1 to i32
    %c0_i32_209 = arith.constant 0 : i32
    %465 = arith.cmpi ne, %464, %c0_i32_209 : i32
    scf.if %465 {
      %c0_210 = arith.constant 0 : index
      %c0_211 = arith.constant 0 : index
      %c0_212 = arith.constant 0 : index
      %466 = vector.load %arg5[%c0_210, %c0_211, %c0_212] : memref<2x2x32xf32, #tpu.memory_space<vmem>>, vector<1x2x32xf32>
      %467 = vector.shape_cast %466 : vector<1x2x32xf32> to vector<2x32xf32>
      %468 = vector.shape_cast %431 : vector<2x32xf32> to vector<1x2x32xf32>
      tpu.vector_store %arg5[%c0_210, %c0_211, %c0_212], %468 {strides = array<i32>} : memref<2x2x32xf32, #tpu.memory_space<vmem>>, vector<1x2x32xf32>,
      %c0_213 = arith.constant 0 : index
      %c0_214 = arith.constant 0 : index
      %c0_215 = arith.constant 0 : index
      %469 = vector.load %arg6[%c0_213, %c0_214, %c0_215] : memref<2x2x32xf32, #tpu.memory_space<vmem>>, vector<1x2x32xf32>
      %470 = vector.shape_cast %469 : vector<1x2x32xf32> to vector<2x32xf32>
      %471 = vector.shape_cast %428 : vector<2x32xf32> to vector<1x2x32xf32>
      tpu.vector_store %arg6[%c0_213, %c0_214, %c0_215], %471 {strides = array<i32>} : memref<2x2x32xf32, #tpu.memory_space<vmem>>, vector<1x2x32xf32>,
      %c1_216 = arith.constant 1 : index
      %c0_217 = arith.constant 0 : index
      %c0_218 = arith.constant 0 : index
      %472 = vector.load %arg5[%c1_216, %c0_217, %c0_218] : memref<2x2x32xf32, #tpu.memory_space<vmem>>, vector<1x2x32xf32>
      %473 = vector.shape_cast %472 : vector<1x2x32xf32> to vector<2x32xf32>
      %474 = vector.shape_cast %457 : vector<2x32xf32> to vector<1x2x32xf32>
      tpu.vector_store %arg5[%c1_216, %c0_217, %c0_218], %474 {strides = array<i32>} : memref<2x2x32xf32, #tpu.memory_space<vmem>>, vector<1x2x32xf32>,
      %c1_219 = arith.constant 1 : index
      %c0_220 = arith.constant 0 : index
      %c0_221 = arith.constant 0 : index
      %475 = vector.load %arg6[%c1_219, %c0_220, %c0_221] : memref<2x2x32xf32, #tpu.memory_space<vmem>>, vector<1x2x32xf32>
      %476 = vector.shape_cast %475 : vector<1x2x32xf32> to vector<2x32xf32>
      %477 = vector.shape_cast %454 : vector<2x32xf32> to vector<1x2x32xf32>
      tpu.vector_store %arg6[%c1_219, %c0_220, %c0_221], %477 {strides = array<i32>} : memref<2x2x32xf32, #tpu.memory_space<vmem>>, vector<1x2x32xf32>,
    } else {
    }
    return
  }
  func.func @transform_0(%arg0: i32) -> (i32, i32, i32) {
    %c0_i32 = arith.constant 0 : i32
    %c0_i32_0 = arith.constant 0 : i32
    %c0_i32_1 = arith.constant 0 : i32
    return %arg0, %c0_i32, %c0_i32_0 : i32, i32, i32
  }
  func.func @transform_1(%arg0: i32) -> (i32, i32, i32) {
    %c0_i32 = arith.constant 0 : i32
    %c0_i32_0 = arith.constant 0 : i32
    %c0_i32_1 = arith.constant 0 : i32
    %c0_i32_2 = arith.constant 0 : i32
    return %c0_i32, %c0_i32_0, %c0_i32_1 : i32, i32, i32
  }
  func.func @transform_2(%arg0: i32) -> (i32, i32, i32) {
    %c0_i32 = arith.constant 0 : i32
    %c0_i32_0 = arith.constant 0 : i32
    %c0_i32_1 = arith.constant 0 : i32
    %c0_i32_2 = arith.constant 0 : i32
    return %c0_i32, %c0_i32_0, %c0_i32_1 : i32, i32, i32
  }
  func.func @transform_3(%arg0: i32) -> (i32, i32, i32) {
    %c0_i32 = arith.constant 0 : i32
    %c0_i32_0 = arith.constant 0 : i32
    %c0_i32_1 = arith.constant 0 : i32
    return %arg0, %c0_i32, %c0_i32_0 : i32, i32, i32
  }
  func.func @transform_4(%arg0: i32) -> (i32, i32, i32) {
    %c0_i32 = arith.constant 0 : i32
    %c0_i32_0 = arith.constant 0 : i32
    %c0_i32_1 = arith.constant 0 : i32
    %c0_i32_2 = arith.constant 0 : i32
    return %c0_i32, %c0_i32_0, %c0_i32_1 : i32, i32, i32
  }
  func.func @transform_5(%arg0: i32) -> (i32, i32, i32) {
    %c0_i32 = arith.constant 0 : i32
    %c0_i32_0 = arith.constant 0 : i32
    %c0_i32_1 = arith.constant 0 : i32
    %c0_i32_2 = arith.constant 0 : i32
    return %c0_i32, %c0_i32_0, %c0_i32_1 : i32, i32, i32
  }
}

</mosaic_0001>

<llo_original>
// kernel: tpu_custom_call.1
$region0: #{tpu_custom_call.1}
  #allocation0 [shape = 'u32[]', space=smem, size = 0x4, offset = 0x4, fixed_abs, tag = 'smem constant byte address 0x4 - core index']
  #allocation1 [shape = 'u32[144,128]{1,0:T(1,128)}', space=vmem, size = 0x12000, scoped, tag = 'internal scratch']
  #allocation2 [shape = 'f32[2,32]{1,0:T(2,128)}', space=vmem, size = 0x400, scoped, tag = 'scratch operand']
  #allocation3 [shape = 'f32[2,32]{1,0:T(2,128)}', space=vmem, size = 0x400, scoped, tag = 'scratch operand']
  %s0 = inlined_call_operand.hbm [shape: f32[8,2,32], index: 0, kind: input, shape index: {}]
  %s1 = inlined_call_operand.hbm [shape: f32[2,64,128], index: 1, kind: input, shape index: {}]
  %s2 = inlined_call_operand.vmem [shape: f32[2,1,128], index: 2, kind: input, shape index: {}]
  %s3 = inlined_call_operand.hbm [shape: f32[8,2,32], index: 3, kind: output, shape index: {0}]
  %s4 = inlined_call_operand.hbm [shape: f32[2,2,32], index: 4, kind: output, shape index: {1}]
  %s5 = inlined_call_operand.hbm [shape: f32[2,2,32], index: 5, kind: output, shape index: {2}]
  %6 = xla_tuple %s3, %s4, %s5
  %s7 = sld [smem:[#allocation0]]
  $region54: #{tpu_custom_call.1} parent=0
    _
  %s9 = ssub.s32 1, %s7
  %s10 = scalar_select 0, %s9, %s7
  $region1: #{tpu_custom_call.1} parent=0
    #allocation4 [shape = 'u8[8192]{0}', space=vmem, size = 0x2000, scoped, tag = 'input window, operand 0, single buffered']
    #allocation5 [shape = 's32[1]{0}', space=sflag, size = 0x4, scoped, tag = 'scoped memory for tpu_custom_call.1']
    #allocation6 [shape = 's32[1]{0}', space=sflag, size = 0x4, scoped, tag = 'scoped memory for tpu_custom_call.1']
    #allocation7 [shape = 'u8[65536]{0}', space=vmem, size = 0x10000, scoped, tag = 'input window, operand 1, single buffered']
    #allocation8 [shape = 's32[1]{0}', space=sflag, size = 0x4, scoped, tag = 'scoped memory for tpu_custom_call.1']
    #allocation9 [shape = 'u8[8192]{0}', space=vmem, size = 0x2000, scoped, tag = 'output window, operand 0, single buffered']
    #allocation10 [shape = 'u8[2048]{0}', space=vmem, size = 0x800, scoped, tag = 'output window, operand 1, single buffered']
    #allocation11 [shape = 's32[1]{0}', space=sflag, size = 0x4, scoped, tag = 'scoped memory for tpu_custom_call.1']
    #allocation12 [shape = 'u8[2048]{0}', space=vmem, size = 0x800, scoped, tag = 'output window, operand 2, single buffered']
    %11 = vsyncpa [#allocation5], 0
    %12 = vsyncpa [#allocation8], 0
    %13 = vsyncpa [#allocation6], 0
    %14 = vsyncpa [#allocation11], 0
    // Predicated region
    $region2: #{tpu_custom_call.1} parent=1 // pred_check
      _
    $region3: #{tpu_custom_call.1} parent=1 // pred_check_branch
      %16 = sbr.rel (0) target = $region5
    $region4: #{tpu_custom_call.1} parent=1 // pred_region
      %s18 = ssub.s32 256, 256
      %19 = vsyncadd [#allocation5], %s18
      %s20 = sshll.u32 [#allocation4], 4
      %s21 = int_to_ptr.vmem [resolvable:$true] %s20
      %26 = dma.hbm_to_vmem [thread:$0]  %s0, 256, %s21, [#allocation5], 32, 32, 2
    $region5: #{tpu_custom_call.1} parent=1 // pred_fallthru
      _
    // Predicated region
    $region6: #{tpu_custom_call.1} parent=1 // pred_check
      _
    $region7: #{tpu_custom_call.1} parent=1 // pred_check_branch
      %28 = sbr.rel (0) target = $region9
    $region8: #{tpu_custom_call.1} parent=1 // pred_region
      %s30 = ssub.s32 2048, 2048
      %31 = vsyncadd [#allocation8], %s30
      %s32 = sshll.u32 [#allocation7], 4
      %s33 = int_to_ptr.vmem [resolvable:$true] %s32
      %38 = dma.hbm_to_vmem [thread:$0]  %s1, 2048, %s33, [#allocation8], 128, 128, 8
    $region9: #{tpu_custom_call.1} parent=1 // pred_fallthru
      _
    // Predicated region
    $region10: #{tpu_custom_call.1} parent=1 // pred_check
      _
    $region11: #{tpu_custom_call.1} parent=1 // pred_check_branch
      %40 = sbr.rel (0) target = $region13
    $region12: #{tpu_custom_call.1} parent=1 // pred_region
      _
    $region13: #{tpu_custom_call.1} parent=1 // pred_fallthru
      _
    // Predicated region
    $region14: #{tpu_custom_call.1} parent=1 // pred_check
      _
    $region15: #{tpu_custom_call.1} parent=1 // pred_check_branch
      %42 = sbr.rel (0) target = $region17
    $region16: #{tpu_custom_call.1} parent=1 // pred_region
      %43 = dma.done [#allocation5], 256
    $region17: #{tpu_custom_call.1} parent=1 // pred_fallthru
      _
    // Predicated region
    $region18: #{tpu_custom_call.1} parent=1 // pred_check
      _
    $region19: #{tpu_custom_call.1} parent=1 // pred_check_branch
      %45 = sbr.rel (0) target = $region21
    $region20: #{tpu_custom_call.1} parent=1 // pred_region
      %46 = dma.done [#allocation8], 2048
    $region21: #{tpu_custom_call.1} parent=1 // pred_fallthru
      _
    %p47 = scmp.eq.s32.totalorder 0, 0
    // Predicated region
    $region22: #{tpu_custom_call.1} parent=1 // pred_check
      %p48 = pneg %p47
    $region23: #{tpu_custom_call.1} parent=1 // pred_check_branch
      %50 = sbr.rel (%p48) target = $region25
    $region24: #{tpu_custom_call.1} parent=1 // pred_region
      %vm51 = vcmask 254976
      %52 = vst.msk [vmem:[#allocation2] sm:$0x3] %vm51, 0.0
      %53 = vst.msk [vmem:[#allocation3] sm:$0x3] %vm51, 0.0
    $region25: #{tpu_custom_call.1} parent=1 // pred_fallthru
      _
    %v54 = vld [vmem:[#allocation2] sm:$0x3]
    %v55 = vld [vmem:[#allocation3] sm:$0x3]
    %v56 = vld [vmem:[#allocation4] sm:$0x3]
    %58 = vrot.lane.b32.xlu0 %v54, 32
    %v59 = vpop.permute.xlu0 %58
    %vm61 = vcmask 261120
    %v62 = vsel %vm61, %v56, %v59
    %v63 = vld [vmem:[#allocation7] sm:$0xff]
    %v64 = vld [vmem:[#allocation7 + $0x8] sm:$0xff]
    %v65 = vld [vmem:[#allocation7 + $0x10] sm:$0xff]
    %v66 = vld [vmem:[#allocation7 + $0x18] sm:$0xff]
    %v67 = vld [vmem:[#allocation7 + $0x20] sm:$0xff]
    %v68 = vld [vmem:[#allocation7 + $0x28] sm:$0xff]
    %v69 = vld [vmem:[#allocation7 + $0x30] sm:$0xff]
    %v70 = vld [vmem:[#allocation7 + $0x38] sm:$0xff]
    %v71 = vld [vmem:[%s2] sm:$0x1]
    %v73 = vlaneseq
    %v74 = vshrl.u32 %v73, 7
    %v75 = vsub.s32 0, %v74
    %v76 = vrot.slane %v71, %v75
    %vm78 = vcmask 523264
    %v80 = vsel %vm78, %v62, 0
    %82 = vmatprep.subr.mxu0 0.0
    %83 = vmatpush1.msra.mxu0 0.0
    %84 = vmatprep.subr.mxu0 0.0
    %85 = vmatpush1.msra.mxu0 0.0
    %86 = vmatprep.subr.mxu0 0.0
    %87 = vmatpush1.msra.mxu0 0.0
    %88 = vmatprep.subr.mxu0 0.0
    %89 = vmatpush1.msra.mxu0 0.0
    %90 = vmatprep.subr.mxu0 0.0
    %91 = vmatpush1.msra.mxu0 0.0
    %92 = vmatprep.subr.mxu0 0.0
    %93 = vmatpush1.msra.mxu0 0.0
    %94 = vmatprep.subr.mxu0 0.0
    %95 = vmatpush1.msra.mxu0 0.0
    %96 = vmatprep.subr.mxu0 0.0
    %97 = vmatpush1.msra.mxu0 0.0
    %98 = vmatprep.subr.mxu0 0.0
    %99 = vmatpush1.msra.mxu0 %v70
    %100 = vmatprep.subr.mxu0 0.0
    %101 = vmatpush1.msra.mxu0 %v69
    %102 = vmatprep.subr.mxu0 0.0
    %103 = vmatpush1.msra.mxu0 %v68
    %104 = vmatprep.subr.mxu0 0.0
    %105 = vmatpush1.msra.mxu0 %v67
    %106 = vmatprep.subr.mxu0 0.0
    %107 = vmatpush1.msra.mxu0 %v66
    %108 = vmatprep.subr.mxu0 0.0
    %109 = vmatpush1.msra.mxu0 %v65
    %110 = vmatprep.subr.mxu0 0.0
    %111 = vmatpush1.msra.mxu0 %v64
    %112 = vmatprep.subr.mxu0 0.0
    %113 = vmatpush1.msra.mxu0 %v63
    %114 = vmatprep.subr.mxu0 0.0
    %115 = vmatpush2.msra.mxu0 0.0
    %116 = vmatprep.subr.mxu0 0.0
    %117 = vmatpush2.msra.mxu0 0.0
    %118 = vmatprep.subr.mxu0 0.0
    %119 = vmatpush2.msra.mxu0 0.0
    %120 = vmatprep.subr.mxu0 0.0
    %121 = vmatpush2.msra.mxu0 0.0
    %122 = vmatprep.subr.mxu0 0.0
    %123 = vmatpush2.msra.mxu0 0.0
    %124 = vmatprep.subr.mxu0 0.0
    %125 = vmatpush2.msra.mxu0 0.0
    %126 = vmatprep.subr.mxu0 0.0
    %127 = vmatpush2.msra.mxu0 0.0
    %128 = vmatprep.subr.mxu0 0.0
    %129 = vmatpush2.msra.mxu0 0.0
    %130 = vmatprep.subr.mxu0 0.0
    %131 = vmatpush2.msra.mxu0 0.0
    %132 = vmatprep.subr.mxu0 0.0
    %133 = vmatpush2.msra.mxu0 0.0
    %134 = vmatprep.subr.mxu0 0.0
    %135 = vmatpush2.msra.mxu0 0.0
    %136 = vmatprep.subr.mxu0 0.0
    %137 = vmatpush2.msra.mxu0 0.0
    %138 = vmatprep.subr.mxu0 0.0
    %139 = vmatpush2.msra.mxu0 0.0
    %140 = vmatprep.subr.mxu0 0.0
    %141 = vmatpush2.msra.mxu0 0.0
    %142 = vmatprep.subr.mxu0 0.0
    %143 = vmatpush2.msra.mxu0 0.0
    %144 = vmatprep.subr.mxu0 0.0
    %145 = vmatpush2.msra.mxu0 0.0
    %146 = vmatprep.mubr.f32.mxu0 0.0
    %147 = vmatmul.mubr.f32.gmra.mxu0 %v80
    %v148 = vpop.f32.mrf.mxu0
    %v149 = vadd.f32 %v76, %v148
    %v150 = vpop.f32.mrf.mxu0
    %151 = vdwg.mxu0
    %v152 = vxor.u32 %v149, 2147483648
    %v153 = vmul.f32 %v152, 1.442695
    %v154 = vpow.pop %v153
    %v155 = vadd.f32 %v154, 1.0
    %v156 = vrcp.pop %v155
    %v157 = vmul.f32 1.0, %v156
    %v158 = vmax.f32 %v149, 0.0
    %160 = vrot.lane.b32.xlu0 %v55, 32
    %v161 = vpop.permute.xlu0 %160
    %v163 = vmul.f32 %v157, %v161
    %165 = vrot.lane.b32.xlu0 %v158, 32
    %v166 = vpop.permute.xlu0 %165
    %v168 = vmul.f32 %v157, %v166
    %170 = vrot.lane.b32.xlu0 %v168, 32
    %v171 = vpop.permute.xlu0 %170
    %v173 = vadd.f32 %v163, %v171
    %v174 = vmax.f32 %v173, 0.0
    %176 = vrot.lane.b32.xlu0 %v174, 32
    %v177 = vpop.permute.xlu0 %176
    %v179 = vmul.f32 %v157, %v177
    %181 = vrot.lane.b32.xlu0 %v179, 64
    %v182 = vpop.permute.xlu0 %181
    %184 = vrot.lane.b32.xlu0 %v179, 96
    %v185 = vpop.permute.xlu0 %184
    %v187 = vsel %vm61, %v182, %v185
    %s188 = scalar_lea.vmem [#allocation7], 64
    %v189 = vld [vmem:[%s188] sm:$0xff]
    %v190 = vld [vmem:[%s188 + $0x8] sm:$0xff]
    %v191 = vld [vmem:[%s188 + $0x10] sm:$0xff]
    %v192 = vld [vmem:[%s188 + $0x18] sm:$0xff]
    %v193 = vld [vmem:[%s188 + $0x20] sm:$0xff]
    %v194 = vld [vmem:[%s188 + $0x28] sm:$0xff]
    %v195 = vld [vmem:[%s188 + $0x30] sm:$0xff]
    %v196 = vld [vmem:[%s188 + $0x38] sm:$0xff]
    %s197 = scalar_lea.vmem %s2, 1
    %v198 = vld [vmem:[%s197] sm:$0x1]
    %v200 = vlaneseq
    %v201 = vshrl.u32 %v200, 7
    %v202 = vsub.s32 0, %v201
    %v203 = vrot.slane %v198, %v202
    %v206 = vsel %vm78, %v187, 0
    %208 = vmatprep.subr.mxu0 0.0
    %209 = vmatpush1.msra.mxu0 0.0
    %210 = vmatprep.subr.mxu0 0.0
    %211 = vmatpush1.msra.mxu0 0.0
    %212 = vmatprep.subr.mxu0 0.0
    %213 = vmatpush1.msra.mxu0 0.0
    %214 = vmatprep.subr.mxu0 0.0
    %215 = vmatpush1.msra.mxu0 0.0
    %216 = vmatprep.subr.mxu0 0.0
    %217 = vmatpush1.msra.mxu0 0.0
    %218 = vmatprep.subr.mxu0 0.0
    %219 = vmatpush1.msra.mxu0 0.0
    %220 = vmatprep.subr.mxu0 0.0
    %221 = vmatpush1.msra.mxu0 0.0
    %222 = vmatprep.subr.mxu0 0.0
    %223 = vmatpush1.msra.mxu0 0.0
    %224 = vmatprep.subr.mxu0 0.0
    %225 = vmatpush1.msra.mxu0 %v196
    %226 = vmatprep.subr.mxu0 0.0
    %227 = vmatpush1.msra.mxu0 %v195
    %228 = vmatprep.subr.mxu0 0.0
    %229 = vmatpush1.msra.mxu0 %v194
    %230 = vmatprep.subr.mxu0 0.0
    %231 = vmatpush1.msra.mxu0 %v193
    %232 = vmatprep.subr.mxu0 0.0
    %233 = vmatpush1.msra.mxu0 %v192
    %234 = vmatprep.subr.mxu0 0.0
    %235 = vmatpush1.msra.mxu0 %v191
    %236 = vmatprep.subr.mxu0 0.0
    %237 = vmatpush1.msra.mxu0 %v190
    %238 = vmatprep.subr.mxu0 0.0
    %239 = vmatpush1.msra.mxu0 %v189
    %240 = vmatprep.subr.mxu0 0.0
    %241 = vmatpush2.msra.mxu0 0.0
    %242 = vmatprep.subr.mxu0 0.0
    %243 = vmatpush2.msra.mxu0 0.0
    %244 = vmatprep.subr.mxu0 0.0
    %245 = vmatpush2.msra.mxu0 0.0
    %246 = vmatprep.subr.mxu0 0.0
    %247 = vmatpush2.msra.mxu0 0.0
    %248 = vmatprep.subr.mxu0 0.0
    %249 = vmatpush2.msra.mxu0 0.0
    %250 = vmatprep.subr.mxu0 0.0
    %251 = vmatpush2.msra.mxu0 0.0
    %252 = vmatprep.subr.mxu0 0.0
    %253 = vmatpush2.msra.mxu0 0.0
    %254 = vmatprep.subr.mxu0 0.0
    %255 = vmatpush2.msra.mxu0 0.0
    %256 = vmatprep.subr.mxu0 0.0
    %257 = vmatpush2.msra.mxu0 0.0
    %258 = vmatprep.subr.mxu0 0.0
    %259 = vmatpush2.msra.mxu0 0.0
    %260 = vmatprep.subr.mxu0 0.0
    %261 = vmatpush2.msra.mxu0 0.0
    %262 = vmatprep.subr.mxu0 0.0
    %263 = vmatpush2.msra.mxu0 0.0
    %264 = vmatprep.subr.mxu0 0.0
    %265 = vmatpush2.msra.mxu0 0.0
    %266 = vmatprep.subr.mxu0 0.0
    %267 = vmatpush2.msra.mxu0 0.0
    %268 = vmatprep.subr.mxu0 0.0
    %269 = vmatpush2.msra.mxu0 0.0
    %270 = vmatprep.subr.mxu0 0.0
    %271 = vmatpush2.msra.mxu0 0.0
    %272 = vmatprep.mubr.f32.mxu0 0.0
    %273 = vmatmul.mubr.f32.gmra.mxu0 %v206
    %v274 = vpop.f32.mrf.mxu0
    %v275 = vadd.f32 %v203, %v274
    %v276 = vpop.f32.mrf.mxu0
    %277 = vdwg.mxu0
    %v278 = vxor.u32 %v275, 2147483648
    %v279 = vmul.f32 %v278, 1.442695
    %v280 = vpow.pop %v279
    %v281 = vadd.f32 %v280, 1.0
    %v282 = vrcp.pop %v281
    %v283 = vmul.f32 1.0, %v282
    %v284 = vmax.f32 %v275, 0.0
    %v285 = vmul.f32 %v283, %v173
    %287 = vrot.lane.b32.xlu0 %v284, 32
    %v288 = vpop.permute.xlu0 %287
    %v290 = vmul.f32 %v283, %v288
    %292 = vrot.lane.b32.xlu0 %v290, 32
    %v293 = vpop.permute.xlu0 %292
    %v295 = vadd.f32 %v285, %v293
    %v296 = vmax.f32 %v295, 0.0
    %298 = vrot.lane.b32.xlu0 %v296, 32
    %v299 = vpop.permute.xlu0 %298
    %v301 = vmul.f32 %v283, %v299
    %303 = vrot.lane.b32.xlu0 %v301, 64
    %v304 = vpop.permute.xlu0 %303
    %vm306 = vcmask 254976
    %307 = vst.msk [vmem:[#allocation9] sm:$0x3] %vm306, %v304
    %s308 = scalar_lea.vmem [#allocation4], 2
    %v309 = vld [vmem:[%s308] sm:$0x3]
    %310 = vrot.lane.b32.xlu0 %v301, 96
    %v311 = vpop.permute.xlu0 %310
    %v313 = vsel %vm61, %v309, %v311
    %v314 = vld [vmem:[#allocation7] sm:$0xff]
    %v315 = vld [vmem:[#allocation7 + $0x8] sm:$0xff]
    %v316 = vld [vmem:[#allocation7 + $0x10] sm:$0xff]
    %v317 = vld [vmem:[#allocation7 + $0x18] sm:$0xff]
    %v318 = vld [vmem:[#allocation7 + $0x20] sm:$0xff]
    %v319 = vld [vmem:[#allocation7 + $0x28] sm:$0xff]
    %v320 = vld [vmem:[#allocation7 + $0x30] sm:$0xff]
    %v321 = vld [vmem:[#allocation7 + $0x38] sm:$0xff]
    %v322 = vld [vmem:[%s2] sm:$0x1]
    %v324 = vlaneseq
    %v325 = vshrl.u32 %v324, 7
    %v326 = vsub.s32 0, %v325
    %v327 = vrot.slane %v322, %v326
    %v330 = vsel %vm78, %v313, 0
    %332 = vmatprep.subr.mxu0 0.0
    %333 = vmatpush1.msra.mxu0 0.0
    %334 = vmatprep.subr.mxu0 0.0
    %335 = vmatpush1.msra.mxu0 0.0
    %336 = vmatprep.subr.mxu0 0.0
    %337 = vmatpush1.msra.mxu0 0.0
    %338 = vmatprep.subr.mxu0 0.0
    %339 = vmatpush1.msra.mxu0 0.0
    %340 = vmatprep.subr.mxu0 0.0
    %341 = vmatpush1.msra.mxu0 0.0
    %342 = vmatprep.subr.mxu0 0.0
    %343 = vmatpush1.msra.mxu0 0.0
    %344 = vmatprep.subr.mxu0 0.0
    %345 = vmatpush1.msra.mxu0 0.0
    %346 = vmatprep.subr.mxu0 0.0
    %347 = vmatpush1.msra.mxu0 0.0
    %348 = vmatprep.subr.mxu0 0.0
    %349 = vmatpush1.msra.mxu0 %v321
    %350 = vmatprep.subr.mxu0 0.0
    %351 = vmatpush1.msra.mxu0 %v320
    %352 = vmatprep.subr.mxu0 0.0
    %353 = vmatpush1.msra.mxu0 %v319
    %354 = vmatprep.subr.mxu0 0.0
    %355 = vmatpush1.msra.mxu0 %v318
    %356 = vmatprep.subr.mxu0 0.0
    %357 = vmatpush1.msra.mxu0 %v317
    %358 = vmatprep.subr.mxu0 0.0
    %359 = vmatpush1.msra.mxu0 %v316
    %360 = vmatprep.subr.mxu0 0.0
    %361 = vmatpush1.msra.mxu0 %v315
    %362 = vmatprep.subr.mxu0 0.0
    %363 = vmatpush1.msra.mxu0 %v314
    %364 = vmatprep.subr.mxu0 0.0
    %365 = vmatpush2.msra.mxu0 0.0
    %366 = vmatprep.subr.mxu0 0.0
    %367 = vmatpush2.msra.mxu0 0.0
    %368 = vmatprep.subr.mxu0 0.0
    %369 = vmatpush2.msra.mxu0 0.0
    %370 = vmatprep.subr.mxu0 0.0
    %371 = vmatpush2.msra.mxu0 0.0
    %372 = vmatprep.subr.mxu0 0.0
    %373 = vmatpush2.msra.mxu0 0.0
    %374 = vmatprep.subr.mxu0 0.0
    %375 = vmatpush2.msra.mxu0 0.0
    %376 = vmatprep.subr.mxu0 0.0
    %377 = vmatpush2.msra.mxu0 0.0
    %378 = vmatprep.subr.mxu0 0.0
    %379 = vmatpush2.msra.mxu0 0.0
    %380 = vmatprep.subr.mxu0 0.0
    %381 = vmatpush2.msra.mxu0 0.0
    %382 = vmatprep.subr.mxu0 0.0
    %383 = vmatpush2.msra.mxu0 0.0
    %384 = vmatprep.subr.mxu0 0.0
    %385 = vmatpush2.msra.mxu0 0.0
    %386 = vmatprep.subr.mxu0 0.0
    %387 = vmatpush2.msra.mxu0 0.0
    %388 = vmatprep.subr.mxu0 0.0
    %389 = vmatpush2.msra.mxu0 0.0
    %390 = vmatprep.subr.mxu0 0.0
    %391 = vmatpush2.msra.mxu0 0.0
    %392 = vmatprep.subr.mxu0 0.0
    %393 = vmatpush2.msra.mxu0 0.0
    %394 = vmatprep.subr.mxu0 0.0
    %395 = vmatpush2.msra.mxu0 0.0
    %396 = vmatprep.mubr.f32.mxu0 0.0
    %397 = vmatmul.mubr.f32.gmra.mxu0 %v330
    %v398 = vpop.f32.mrf.mxu0
    %v399 = vadd.f32 %v327, %v398
    %v400 = vpop.f32.mrf.mxu0
    %401 = vdwg.mxu0
    %v402 = vxor.u32 %v399, 2147483648
    %v403 = vmul.f32 %v402, 1.442695
    %v404 = vpow.pop %v403
    %v405 = vadd.f32 %v404, 1.0
    %v406 = vrcp.pop %v405
    %v407 = vmul.f32 1.0, %v406
    %v408 = vmax.f32 %v399, 0.0
    %v409 = vmul.f32 %v407, %v295
    %411 = vrot.lane.b32.xlu0 %v408, 32
    %v412 = vpop.permute.xlu0 %411
    %v414 = vmul.f32 %v407, %v412
    %416 = vrot.lane.b32.xlu0 %v414, 32
    %v417 = vpop.permute.xlu0 %416
    %v419 = vadd.f32 %v409, %v417
    %v420 = vmax.f32 %v419, 0.0
    %422 = vrot.lane.b32.xlu0 %v420, 32
    %v423 = vpop.permute.xlu0 %422
    %v425 = vmul.f32 %v407, %v423
    %427 = vrot.lane.b32.xlu0 %v425, 64
    %v428 = vpop.permute.xlu0 %427
    %430 = vrot.lane.b32.xlu0 %v425, 96
    %v431 = vpop.permute.xlu0 %430
    %v433 = vsel %vm61, %v428, %v431
    %v434 = vld [vmem:[%s188] sm:$0xff]
    %v435 = vld [vmem:[%s188 + $0x8] sm:$0xff]
    %v436 = vld [vmem:[%s188 + $0x10] sm:$0xff]
    %v437 = vld [vmem:[%s188 + $0x18] sm:$0xff]
    %v438 = vld [vmem:[%s188 + $0x20] sm:$0xff]
    %v439 = vld [vmem:[%s188 + $0x28] sm:$0xff]
    %v440 = vld [vmem:[%s188 + $0x30] sm:$0xff]
    %v441 = vld [vmem:[%s188 + $0x38] sm:$0xff]
    %v442 = vld [vmem:[%s197] sm:$0x1]
    %v444 = vlaneseq
    %v445 = vshrl.u32 %v444, 7
    %v446 = vsub.s32 0, %v445
    %v447 = vrot.slane %v442, %v446
    %v450 = vsel %vm78, %v433, 0
    %452 = vmatprep.subr.mxu0 0.0
    %453 = vmatpush1.msra.mxu0 0.0
    %454 = vmatprep.subr.mxu0 0.0
    %455 = vmatpush1.msra.mxu0 0.0
    %456 = vmatprep.subr.mxu0 0.0
    %457 = vmatpush1.msra.mxu0 0.0
    %458 = vmatprep.subr.mxu0 0.0
    %459 = vmatpush1.msra.mxu0 0.0
    %460 = vmatprep.subr.mxu0 0.0
    %461 = vmatpush1.msra.mxu0 0.0
    %462 = vmatprep.subr.mxu0 0.0
    %463 = vmatpush1.msra.mxu0 0.0
    %464 = vmatprep.subr.mxu0 0.0
    %465 = vmatpush1.msra.mxu0 0.0
    %466 = vmatprep.subr.mxu0 0.0
    %467 = vmatpush1.msra.mxu0 0.0
    %468 = vmatprep.subr.mxu0 0.0
    %469 = vmatpush1.msra.mxu0 %v441
    %470 = vmatprep.subr.mxu0 0.0
    %471 = vmatpush1.msra.mxu0 %v440
    %472 = vmatprep.subr.mxu0 0.0
    %473 = vmatpush1.msra.mxu0 %v439
    %474 = vmatprep.subr.mxu0 0.0
    %475 = vmatpush1.msra.mxu0 %v438
    %476 = vmatprep.subr.mxu0 0.0
    %477 = vmatpush1.msra.mxu0 %v437
    %478 = vmatprep.subr.mxu0 0.0
    %479 = vmatpush1.msra.mxu0 %v436
    %480 = vmatprep.subr.mxu0 0.0
    %481 = vmatpush1.msra.mxu0 %v435
    %482 = vmatprep.subr.mxu0 0.0
    %483 = vmatpush1.msra.mxu0 %v434
    %484 = vmatprep.subr.mxu0 0.0
    %485 = vmatpush2.msra.mxu0 0.0
    %486 = vmatprep.subr.mxu0 0.0
    %487 = vmatpush2.msra.mxu0 0.0
    %488 = vmatprep.subr.mxu0 0.0
    %489 = vmatpush2.msra.mxu0 0.0
    %490 = vmatprep.subr.mxu0 0.0
    %491 = vmatpush2.msra.mxu0 0.0
    %492 = vmatprep.subr.mxu0 0.0
    %493 = vmatpush2.msra.mxu0 0.0
    %494 = vmatprep.subr.mxu0 0.0
    %495 = vmatpush2.msra.mxu0 0.0
    %496 = vmatprep.subr.mxu0 0.0
    %497 = vmatpush2.msra.mxu0 0.0
    %498 = vmatprep.subr.mxu0 0.0
    %499 = vmatpush2.msra.mxu0 0.0
    %500 = vmatprep.subr.mxu0 0.0
    %501 = vmatpush2.msra.mxu0 0.0
    %502 = vmatprep.subr.mxu0 0.0
    %503 = vmatpush2.msra.mxu0 0.0
    %504 = vmatprep.subr.mxu0 0.0
    %505 = vmatpush2.msra.mxu0 0.0
    %506 = vmatprep.subr.mxu0 0.0
    %507 = vmatpush2.msra.mxu0 0.0
    %508 = vmatprep.subr.mxu0 0.0
    %509 = vmatpush2.msra.mxu0 0.0
    %510 = vmatprep.subr.mxu0 0.0
    %511 = vmatpush2.msra.mxu0 0.0
    %512 = vmatprep.subr.mxu0 0.0
    %513 = vmatpush2.msra.mxu0 0.0
    %514 = vmatprep.subr.mxu0 0.0
    %515 = vmatpush2.msra.mxu0 0.0
    %516 = vmatprep.mubr.f32.mxu0 0.0
    %517 = vmatmul.mubr.f32.gmra.mxu0 %v450
    %v518 = vpop.f32.mrf.mxu0
    %v519 = vadd.f32 %v447, %v518
    %v520 = vpop.f32.mrf.mxu0
    %521 = vdwg.mxu0
    %v522 = vxor.u32 %v519, 2147483648
    %v523 = vmul.f32 %v522, 1.442695
    %v524 = vpow.pop %v523
    %v525 = vadd.f32 %v524, 1.0
    %v526 = vrcp.pop %v525
    %v527 = vmul.f32 1.0, %v526
    %v528 = vmax.f32 %v519, 0.0
    %v529 = vmul.f32 %v527, %v419
    %531 = vrot.lane.b32.xlu0 %v528, 32
    %v532 = vpop.permute.xlu0 %531
    %v534 = vmul.f32 %v527, %v532
    %536 = vrot.lane.b32.xlu0 %v534, 32
    %v537 = vpop.permute.xlu0 %536
    %v539 = vadd.f32 %v529, %v537
    %v540 = vmax.f32 %v539, 0.0
    %542 = vrot.lane.b32.xlu0 %v540, 32
    %v543 = vpop.permute.xlu0 %542
    %v545 = vmul.f32 %v527, %v543
    %547 = vrot.lane.b32.xlu0 %v545, 64
    %v548 = vpop.permute.xlu0 %547
    %s550 = scalar_lea.vmem [#allocation9], 2
    %551 = vst.msk [vmem:[%s550] sm:$0x3] %vm306, %v548
    %s552 = scalar_lea.vmem [#allocation4], 4
    %v553 = vld [vmem:[%s552] sm:$0x3]
    %554 = vrot.lane.b32.xlu0 %v545, 96
    %v555 = vpop.permute.xlu0 %554
    %v557 = vsel %vm61, %v553, %v555
    %v558 = vld [vmem:[#allocation7] sm:$0xff]
    %v559 = vld [vmem:[#allocation7 + $0x8] sm:$0xff]
    %v560 = vld [vmem:[#allocation7 + $0x10] sm:$0xff]
    %v561 = vld [vmem:[#allocation7 + $0x18] sm:$0xff]
    %v562 = vld [vmem:[#allocation7 + $0x20] sm:$0xff]
    %v563 = vld [vmem:[#allocation7 + $0x28] sm:$0xff]
    %v564 = vld [vmem:[#allocation7 + $0x30] sm:$0xff]
    %v565 = vld [vmem:[#allocation7 + $0x38] sm:$0xff]
    %v566 = vld [vmem:[%s2] sm:$0x1]
    %v568 = vlaneseq
    %v569 = vshrl.u32 %v568, 7
    %v570 = vsub.s32 0, %v569
    %v571 = vrot.slane %v566, %v570
    %v574 = vsel %vm78, %v557, 0
    %576 = vmatprep.subr.mxu0 0.0
    %577 = vmatpush1.msra.mxu0 0.0
    %578 = vmatprep.subr.mxu0 0.0
    %579 = vmatpush1.msra.mxu0 0.0
    %580 = vmatprep.subr.mxu0 0.0
    %581 = vmatpush1.msra.mxu0 0.0
    %582 = vmatprep.subr.mxu0 0.0
    %583 = vmatpush1.msra.mxu0 0.0
    %584 = vmatprep.subr.mxu0 0.0
    %585 = vmatpush1.msra.mxu0 0.0
    %586 = vmatprep.subr.mxu0 0.0
    %587 = vmatpush1.msra.mxu0 0.0
    %588 = vmatprep.subr.mxu0 0.0
    %589 = vmatpush1.msra.mxu0 0.0
    %590 = vmatprep.subr.mxu0 0.0
    %591 = vmatpush1.msra.mxu0 0.0
    %592 = vmatprep.subr.mxu0 0.0
    %593 = vmatpush1.msra.mxu0 %v565
    %594 = vmatprep.subr.mxu0 0.0
    %595 = vmatpush1.msra.mxu0 %v564
    %596 = vmatprep.subr.mxu0 0.0
    %597 = vmatpush1.msra.mxu0 %v563
    %598 = vmatprep.subr.mxu0 0.0
    %599 = vmatpush1.msra.mxu0 %v562
    %600 = vmatprep.subr.mxu0 0.0
    %601 = vmatpush1.msra.mxu0 %v561
    %602 = vmatprep.subr.mxu0 0.0
    %603 = vmatpush1.msra.mxu0 %v560
    %604 = vmatprep.subr.mxu0 0.0
    %605 = vmatpush1.msra.mxu0 %v559
    %606 = vmatprep.subr.mxu0 0.0
    %607 = vmatpush1.msra.mxu0 %v558
    %608 = vmatprep.subr.mxu0 0.0
    %609 = vmatpush2.msra.mxu0 0.0
    %610 = vmatprep.subr.mxu0 0.0
    %611 = vmatpush2.msra.mxu0 0.0
    %612 = vmatprep.subr.mxu0 0.0
    %613 = vmatpush2.msra.mxu0 0.0
    %614 = vmatprep.subr.mxu0 0.0
    %615 = vmatpush2.msra.mxu0 0.0
    %616 = vmatprep.subr.mxu0 0.0
    %617 = vmatpush2.msra.mxu0 0.0
    %618 = vmatprep.subr.mxu0 0.0
    %619 = vmatpush2.msra.mxu0 0.0
    %620 = vmatprep.subr.mxu0 0.0
    %621 = vmatpush2.msra.mxu0 0.0
    %622 = vmatprep.subr.mxu0 0.0
    %623 = vmatpush2.msra.mxu0 0.0
    %624 = vmatprep.subr.mxu0 0.0
    %625 = vmatpush2.msra.mxu0 0.0
    %626 = vmatprep.subr.mxu0 0.0
    %627 = vmatpush2.msra.mxu0 0.0
    %628 = vmatprep.subr.mxu0 0.0
    %629 = vmatpush2.msra.mxu0 0.0
    %630 = vmatprep.subr.mxu0 0.0
    %631 = vmatpush2.msra.mxu0 0.0
    %632 = vmatprep.subr.mxu0 0.0
    %633 = vmatpush2.msra.mxu0 0.0
    %634 = vmatprep.subr.mxu0 0.0
    %635 = vmatpush2.msra.mxu0 0.0
    %636 = vmatprep.subr.mxu0 0.0
    %637 = vmatpush2.msra.mxu0 0.0
    %638 = vmatprep.subr.mxu0 0.0
    %639 = vmatpush2.msra.mxu0 0.0
    %640 = vmatprep.mubr.f32.mxu0 0.0
    %641 = vmatmul.mubr.f32.gmra.mxu0 %v574
    %v642 = vpop.f32.mrf.mxu0
    %v643 = vadd.f32 %v571, %v642
    %v644 = vpop.f32.mrf.mxu0
    %645 = vdwg.mxu0
    %v646 = vxor.u32 %v643, 2147483648
    %v647 = vmul.f32 %v646, 1.442695
    %v648 = vpow.pop %v647
    %v649 = vadd.f32 %v648, 1.0
    %v650 = vrcp.pop %v649
    %v651 = vmul.f32 1.0, %v650
    %v652 = vmax.f32 %v643, 0.0
    %v653 = vmul.f32 %v651, %v539
    %655 = vrot.lane.b32.xlu0 %v652, 32
    %v656 = vpop.permute.xlu0 %655
    %v658 = vmul.f32 %v651, %v656
    %660 = vrot.lane.b32.xlu0 %v658, 32
    %v661 = vpop.permute.xlu0 %660
    %v663 = vadd.f32 %v653, %v661
    %v664 = vmax.f32 %v663, 0.0
    %666 = vrot.lane.b32.xlu0 %v664, 32
    %v667 = vpop.permute.xlu0 %666
    %v669 = vmul.f32 %v651, %v667
    %671 = vrot.lane.b32.xlu0 %v669, 64
    %v672 = vpop.permute.xlu0 %671
    %674 = vrot.lane.b32.xlu0 %v669, 96
    %v675 = vpop.permute.xlu0 %674
    %v677 = vsel %vm61, %v672, %v675
    %v678 = vld [vmem:[%s188] sm:$0xff]
    %v679 = vld [vmem:[%s188 + $0x8] sm:$0xff]
    %v680 = vld [vmem:[%s188 + $0x10] sm:$0xff]
    %v681 = vld [vmem:[%s188 + $0x18] sm:$0xff]
    %v682 = vld [vmem:[%s188 + $0x20] sm:$0xff]
    %v683 = vld [vmem:[%s188 + $0x28] sm:$0xff]
    %v684 = vld [vmem:[%s188 + $0x30] sm:$0xff]
    %v685 = vld [vmem:[%s188 + $0x38] sm:$0xff]
    %v686 = vld [vmem:[%s197] sm:$0x1]
    %v688 = vlaneseq
    %v689 = vshrl.u32 %v688, 7
    %v690 = vsub.s32 0, %v689
    %v691 = vrot.slane %v686, %v690
    %v694 = vsel %vm78, %v677, 0
    %696 = vmatprep.subr.mxu0 0.0
    %697 = vmatpush1.msra.mxu0 0.0
    %698 = vmatprep.subr.mxu0 0.0
    %699 = vmatpush1.msra.mxu0 0.0
    %700 = vmatprep.subr.mxu0 0.0
    %701 = vmatpush1.msra.mxu0 0.0
    %702 = vmatprep.subr.mxu0 0.0
    %703 = vmatpush1.msra.mxu0 0.0
    %704 = vmatprep.subr.mxu0 0.0
    %705 = vmatpush1.msra.mxu0 0.0
    %706 = vmatprep.subr.mxu0 0.0
    %707 = vmatpush1.msra.mxu0 0.0
    %708 = vmatprep.subr.mxu0 0.0
    %709 = vmatpush1.msra.mxu0 0.0
    %710 = vmatprep.subr.mxu0 0.0
    %711 = vmatpush1.msra.mxu0 0.0
    %712 = vmatprep.subr.mxu0 0.0
    %713 = vmatpush1.msra.mxu0 %v685
    %714 = vmatprep.subr.mxu0 0.0
    %715 = vmatpush1.msra.mxu0 %v684
    %716 = vmatprep.subr.mxu0 0.0
    %717 = vmatpush1.msra.mxu0 %v683
    %718 = vmatprep.subr.mxu0 0.0
    %719 = vmatpush1.msra.mxu0 %v682
    %720 = vmatprep.subr.mxu0 0.0
    %721 = vmatpush1.msra.mxu0 %v681
    %722 = vmatprep.subr.mxu0 0.0
    %723 = vmatpush1.msra.mxu0 %v680
    %724 = vmatprep.subr.mxu0 0.0
    %725 = vmatpush1.msra.mxu0 %v679
    %726 = vmatprep.subr.mxu0 0.0
    %727 = vmatpush1.msra.mxu0 %v678
    %728 = vmatprep.subr.mxu0 0.0
    %729 = vmatpush2.msra.mxu0 0.0
    %730 = vmatprep.subr.mxu0 0.0
    %731 = vmatpush2.msra.mxu0 0.0
    %732 = vmatprep.subr.mxu0 0.0
    %733 = vmatpush2.msra.mxu0 0.0
    %734 = vmatprep.subr.mxu0 0.0
    %735 = vmatpush2.msra.mxu0 0.0
    %736 = vmatprep.subr.mxu0 0.0
    %737 = vmatpush2.msra.mxu0 0.0
    %738 = vmatprep.subr.mxu0 0.0
    %739 = vmatpush2.msra.mxu0 0.0
    %740 = vmatprep.subr.mxu0 0.0
    %741 = vmatpush2.msra.mxu0 0.0
    %742 = vmatprep.subr.mxu0 0.0
    %743 = vmatpush2.msra.mxu0 0.0
    %744 = vmatprep.subr.mxu0 0.0
    %745 = vmatpush2.msra.mxu0 0.0
    %746 = vmatprep.subr.mxu0 0.0
    %747 = vmatpush2.msra.mxu0 0.0
    %748 = vmatprep.subr.mxu0 0.0
    %749 = vmatpush2.msra.mxu0 0.0
    %750 = vmatprep.subr.mxu0 0.0
    %751 = vmatpush2.msra.mxu0 0.0
    %752 = vmatprep.subr.mxu0 0.0
    %753 = vmatpush2.msra.mxu0 0.0
    %754 = vmatprep.subr.mxu0 0.0
    %755 = vmatpush2.msra.mxu0 0.0
    %756 = vmatprep.subr.mxu0 0.0
    %757 = vmatpush2.msra.mxu0 0.0
    %758 = vmatprep.subr.mxu0 0.0
    %759 = vmatpush2.msra.mxu0 0.0
    %760 = vmatprep.mubr.f32.mxu0 0.0
    %761 = vmatmul.mubr.f32.gmra.mxu0 %v694
    %v762 = vpop.f32.mrf.mxu0
    %v763 = vadd.f32 %v691, %v762
    %v764 = vpop.f32.mrf.mxu0
    %765 = vdwg.mxu0
    %v766 = vxor.u32 %v763, 2147483648
    %v767 = vmul.f32 %v766, 1.442695
    %v768 = vpow.pop %v767
    %v769 = vadd.f32 %v768, 1.0
    %v770 = vrcp.pop %v769
    %v771 = vmul.f32 1.0, %v770
    %v772 = vmax.f32 %v763, 0.0
    %v773 = vmul.f32 %v771, %v663
    %775 = vrot.lane.b32.xlu0 %v772, 32
    %v776 = vpop.permute.xlu0 %775
    %v778 = vmul.f32 %v771, %v776
    %780 = vrot.lane.b32.xlu0 %v778, 32
    %v781 = vpop.permute.xlu0 %780
    %v783 = vadd.f32 %v773, %v781
    %v784 = vmax.f32 %v783, 0.0
    %786 = vrot.lane.b32.xlu0 %v784, 32
    %v787 = vpop.permute.xlu0 %786
    %v789 = vmul.f32 %v771, %v787
    %791 = vrot.lane.b32.xlu0 %v789, 64
    %v792 = vpop.permute.xlu0 %791
    %s794 = scalar_lea.vmem [#allocation9], 4
    %795 = vst.msk [vmem:[%s794] sm:$0x3] %vm306, %v792
    %s796 = scalar_lea.vmem [#allocation4], 6
    %v797 = vld [vmem:[%s796] sm:$0x3]
    %798 = vrot.lane.b32.xlu0 %v789, 96
    %v799 = vpop.permute.xlu0 %798
    %v801 = vsel %vm61, %v797, %v799
    %v802 = vld [vmem:[#allocation7] sm:$0xff]
    %v803 = vld [vmem:[#allocation7 + $0x8] sm:$0xff]
    %v804 = vld [vmem:[#allocation7 + $0x10] sm:$0xff]
    %v805 = vld [vmem:[#allocation7 + $0x18] sm:$0xff]
    %v806 = vld [vmem:[#allocation7 + $0x20] sm:$0xff]
    %v807 = vld [vmem:[#allocation7 + $0x28] sm:$0xff]
    %v808 = vld [vmem:[#allocation7 + $0x30] sm:$0xff]
    %v809 = vld [vmem:[#allocation7 + $0x38] sm:$0xff]
    %v810 = vld [vmem:[%s2] sm:$0x1]
    %v812 = vlaneseq
    %v813 = vshrl.u32 %v812, 7
    %v814 = vsub.s32 0, %v813
    %v815 = vrot.slane %v810, %v814
    %v818 = vsel %vm78, %v801, 0
    %820 = vmatprep.subr.mxu0 0.0
    %821 = vmatpush1.msra.mxu0 0.0
    %822 = vmatprep.subr.mxu0 0.0
    %823 = vmatpush1.msra.mxu0 0.0
    %824 = vmatprep.subr.mxu0 0.0
    %825 = vmatpush1.msra.mxu0 0.0
    %826 = vmatprep.subr.mxu0 0.0
    %827 = vmatpush1.msra.mxu0 0.0
    %828 = vmatprep.subr.mxu0 0.0
    %829 = vmatpush1.msra.mxu0 0.0
    %830 = vmatprep.subr.mxu0 0.0
    %831 = vmatpush1.msra.mxu0 0.0
    %832 = vmatprep.subr.mxu0 0.0
    %833 = vmatpush1.msra.mxu0 0.0
    %834 = vmatprep.subr.mxu0 0.0
    %835 = vmatpush1.msra.mxu0 0.0
    %836 = vmatprep.subr.mxu0 0.0
    %837 = vmatpush1.msra.mxu0 %v809
    %838 = vmatprep.subr.mxu0 0.0
    %839 = vmatpush1.msra.mxu0 %v808
    %840 = vmatprep.subr.mxu0 0.0
    %841 = vmatpush1.msra.mxu0 %v807
    %842 = vmatprep.subr.mxu0 0.0
    %843 = vmatpush1.msra.mxu0 %v806
    %844 = vmatprep.subr.mxu0 0.0
    %845 = vmatpush1.msra.mxu0 %v805
    %846 = vmatprep.subr.mxu0 0.0
    %847 = vmatpush1.msra.mxu0 %v804
    %848 = vmatprep.subr.mxu0 0.0
    %849 = vmatpush1.msra.mxu0 %v803
    %850 = vmatprep.subr.mxu0 0.0
    %851 = vmatpush1.msra.mxu0 %v802
    %852 = vmatprep.subr.mxu0 0.0
    %853 = vmatpush2.msra.mxu0 0.0
    %854 = vmatprep.subr.mxu0 0.0
    %855 = vmatpush2.msra.mxu0 0.0
    %856 = vmatprep.subr.mxu0 0.0
    %857 = vmatpush2.msra.mxu0 0.0
    %858 = vmatprep.subr.mxu0 0.0
    %859 = vmatpush2.msra.mxu0 0.0
    %860 = vmatprep.subr.mxu0 0.0
    %861 = vmatpush2.msra.mxu0 0.0
    %862 = vmatprep.subr.mxu0 0.0
    %863 = vmatpush2.msra.mxu0 0.0
    %864 = vmatprep.subr.mxu0 0.0
    %865 = vmatpush2.msra.mxu0 0.0
    %866 = vmatprep.subr.mxu0 0.0
    %867 = vmatpush2.msra.mxu0 0.0
    %868 = vmatprep.subr.mxu0 0.0
    %869 = vmatpush2.msra.mxu0 0.0
    %870 = vmatprep.subr.mxu0 0.0
    %871 = vmatpush2.msra.mxu0 0.0
    %872 = vmatprep.subr.mxu0 0.0
    %873 = vmatpush2.msra.mxu0 0.0
    %874 = vmatprep.subr.mxu0 0.0
    %875 = vmatpush2.msra.mxu0 0.0
    %876 = vmatprep.subr.mxu0 0.0
    %877 = vmatpush2.msra.mxu0 0.0
    %878 = vmatprep.subr.mxu0 0.0
    %879 = vmatpush2.msra.mxu0 0.0
    %880 = vmatprep.subr.mxu0 0.0
    %881 = vmatpush2.msra.mxu0 0.0
    %882 = vmatprep.subr.mxu0 0.0
    %883 = vmatpush2.msra.mxu0 0.0
    %884 = vmatprep.mubr.f32.mxu0 0.0
    %885 = vmatmul.mubr.f32.gmra.mxu0 %v818
    %v886 = vpop.f32.mrf.mxu0
    %v887 = vadd.f32 %v815, %v886
    %v888 = vpop.f32.mrf.mxu0
    %889 = vdwg.mxu0
    %v890 = vxor.u32 %v887, 2147483648
    %v891 = vmul.f32 %v890, 1.442695
    %v892 = vpow.pop %v891
    %v893 = vadd.f32 %v892, 1.0
    %v894 = vrcp.pop %v893
    %v895 = vmul.f32 1.0, %v894
    %v896 = vmax.f32 %v887, 0.0
    %v897 = vmul.f32 %v895, %v783
    %899 = vrot.lane.b32.xlu0 %v896, 32
    %v900 = vpop.permute.xlu0 %899
    %v902 = vmul.f32 %v895, %v900
    %904 = vrot.lane.b32.xlu0 %v902, 32
    %v905 = vpop.permute.xlu0 %904
    %v907 = vadd.f32 %v897, %v905
    %v908 = vmax.f32 %v907, 0.0
    %910 = vrot.lane.b32.xlu0 %v908, 32
    %v911 = vpop.permute.xlu0 %910
    %v913 = vmul.f32 %v895, %v911
    %915 = vrot.lane.b32.xlu0 %v913, 64
    %v916 = vpop.permute.xlu0 %915
    %918 = vrot.lane.b32.xlu0 %v913, 96
    %v919 = vpop.permute.xlu0 %918
    %v921 = vsel %vm61, %v916, %v919
    %v922 = vld [vmem:[%s188] sm:$0xff]
    %v923 = vld [vmem:[%s188 + $0x8] sm:$0xff]
    %v924 = vld [vmem:[%s188 + $0x10] sm:$0xff]
    %v925 = vld [vmem:[%s188 + $0x18] sm:$0xff]
    %v926 = vld [vmem:[%s188 + $0x20] sm:$0xff]
    %v927 = vld [vmem:[%s188 + $0x28] sm:$0xff]
    %v928 = vld [vmem:[%s188 + $0x30] sm:$0xff]
    %v929 = vld [vmem:[%s188 + $0x38] sm:$0xff]
    %v930 = vld [vmem:[%s197] sm:$0x1]
    %v932 = vlaneseq
    %v933 = vshrl.u32 %v932, 7
    %v934 = vsub.s32 0, %v933
    %v935 = vrot.slane %v930, %v934
    %v938 = vsel %vm78, %v921, 0
    %940 = vmatprep.subr.mxu0 0.0
    %941 = vmatpush1.msra.mxu0 0.0
    %942 = vmatprep.subr.mxu0 0.0
    %943 = vmatpush1.msra.mxu0 0.0
    %944 = vmatprep.subr.mxu0 0.0
    %945 = vmatpush1.msra.mxu0 0.0
    %946 = vmatprep.subr.mxu0 0.0
    %947 = vmatpush1.msra.mxu0 0.0
    %948 = vmatprep.subr.mxu0 0.0
    %949 = vmatpush1.msra.mxu0 0.0
    %950 = vmatprep.subr.mxu0 0.0
    %951 = vmatpush1.msra.mxu0 0.0
    %952 = vmatprep.subr.mxu0 0.0
    %953 = vmatpush1.msra.mxu0 0.0
    %954 = vmatprep.subr.mxu0 0.0
    %955 = vmatpush1.msra.mxu0 0.0
    %956 = vmatprep.subr.mxu0 0.0
    %957 = vmatpush1.msra.mxu0 %v929
    %958 = vmatprep.subr.mxu0 0.0
    %959 = vmatpush1.msra.mxu0 %v928
    %960 = vmatprep.subr.mxu0 0.0
    %961 = vmatpush1.msra.mxu0 %v927
    %962 = vmatprep.subr.mxu0 0.0
    %963 = vmatpush1.msra.mxu0 %v926
    %964 = vmatprep.subr.mxu0 0.0
    %965 = vmatpush1.msra.mxu0 %v925
    %966 = vmatprep.subr.mxu0 0.0
    %967 = vmatpush1.msra.mxu0 %v924
    %968 = vmatprep.subr.mxu0 0.0
    %969 = vmatpush1.msra.mxu0 %v923
    %970 = vmatprep.subr.mxu0 0.0
    %971 = vmatpush1.msra.mxu0 %v922
    %972 = vmatprep.subr.mxu0 0.0
    %973 = vmatpush2.msra.mxu0 0.0
    %974 = vmatprep.subr.mxu0 0.0
    %975 = vmatpush2.msra.mxu0 0.0
    %976 = vmatprep.subr.mxu0 0.0
    %977 = vmatpush2.msra.mxu0 0.0
    %978 = vmatprep.subr.mxu0 0.0
    %979 = vmatpush2.msra.mxu0 0.0
    %980 = vmatprep.subr.mxu0 0.0
    %981 = vmatpush2.msra.mxu0 0.0
    %982 = vmatprep.subr.mxu0 0.0
    %983 = vmatpush2.msra.mxu0 0.0
    %984 = vmatprep.subr.mxu0 0.0
    %985 = vmatpush2.msra.mxu0 0.0
    %986 = vmatprep.subr.mxu0 0.0
    %987 = vmatpush2.msra.mxu0 0.0
    %988 = vmatprep.subr.mxu0 0.0
    %989 = vmatpush2.msra.mxu0 0.0
    %990 = vmatprep.subr.mxu0 0.0
    %991 = vmatpush2.msra.mxu0 0.0
    %992 = vmatprep.subr.mxu0 0.0
    %993 = vmatpush2.msra.mxu0 0.0
    %994 = vmatprep.subr.mxu0 0.0
    %995 = vmatpush2.msra.mxu0 0.0
    %996 = vmatprep.subr.mxu0 0.0
    %997 = vmatpush2.msra.mxu0 0.0
    %998 = vmatprep.subr.mxu0 0.0
    %999 = vmatpush2.msra.mxu0 0.0
    %1000 = vmatprep.subr.mxu0 0.0
    %1001 = vmatpush2.msra.mxu0 0.0
    %1002 = vmatprep.subr.mxu0 0.0
    %1003 = vmatpush2.msra.mxu0 0.0
    %1004 = vmatprep.mubr.f32.mxu0 0.0
    %1005 = vmatmul.mubr.f32.gmra.mxu0 %v938
    %v1006 = vpop.f32.mrf.mxu0
    %v1007 = vadd.f32 %v935, %v1006
    %v1008 = vpop.f32.mrf.mxu0
    %1009 = vdwg.mxu0
    %v1010 = vxor.u32 %v1007, 2147483648
    %v1011 = vmul.f32 %v1010, 1.442695
    %v1012 = vpow.pop %v1011
    %v1013 = vadd.f32 %v1012, 1.0
    %v1014 = vrcp.pop %v1013
    %v1015 = vmul.f32 1.0, %v1014
    %v1016 = vmax.f32 %v1007, 0.0
    %v1017 = vmul.f32 %v1015, %v907
    %1019 = vrot.lane.b32.xlu0 %v1016, 32
    %v1020 = vpop.permute.xlu0 %1019
    %v1022 = vmul.f32 %v1015, %v1020
    %1024 = vrot.lane.b32.xlu0 %v1022, 32
    %v1025 = vpop.permute.xlu0 %1024
    %v1027 = vadd.f32 %v1017, %v1025
    %v1028 = vmax.f32 %v1027, 0.0
    %1030 = vrot.lane.b32.xlu0 %v1028, 32
    %v1031 = vpop.permute.xlu0 %1030
    %v1033 = vmul.f32 %v1015, %v1031
    %1035 = vrot.lane.b32.xlu0 %v1033, 64
    %v1036 = vpop.permute.xlu0 %1035
    %s1038 = scalar_lea.vmem [#allocation9], 6
    %1039 = vst.msk [vmem:[%s1038] sm:$0x3] %vm306, %v1036
    %s1040 = scalar_lea.vmem [#allocation4], 8
    %v1041 = vld [vmem:[%s1040] sm:$0x3]
    %1042 = vrot.lane.b32.xlu0 %v1033, 96
    %v1043 = vpop.permute.xlu0 %1042
    %v1045 = vsel %vm61, %v1041, %v1043
    %v1046 = vld [vmem:[#allocation7] sm:$0xff]
    %v1047 = vld [vmem:[#allocation7 + $0x8] sm:$0xff]
    %v1048 = vld [vmem:[#allocation7 + $0x10] sm:$0xff]
    %v1049 = vld [vmem:[#allocation7 + $0x18] sm:$0xff]
    %v1050 = vld [vmem:[#allocation7 + $0x20] sm:$0xff]
    %v1051 = vld [vmem:[#allocation7 + $0x28] sm:$0xff]
    %v1052 = vld [vmem:[#allocation7 + $0x30] sm:$0xff]
    %v1053 = vld [vmem:[#allocation7 + $0x38] sm:$0xff]
    %v1054 = vld [vmem:[%s2] sm:$0x1]
    %v1056 = vlaneseq
    %v1057 = vshrl.u32 %v1056, 7
    %v1058 = vsub.s32 0, %v1057
    %v1059 = vrot.slane %v1054, %v1058
    %v1062 = vsel %vm78, %v1045, 0
    %1064 = vmatprep.subr.mxu0 0.0
    %1065 = vmatpush1.msra.mxu0 0.0
    %1066 = vmatprep.subr.mxu0 0.0
    %1067 = vmatpush1.msra.mxu0 0.0
    %1068 = vmatprep.subr.mxu0 0.0
    %1069 = vmatpush1.msra.mxu0 0.0
    %1070 = vmatprep.subr.mxu0 0.0
    %1071 = vmatpush1.msra.mxu0 0.0
    %1072 = vmatprep.subr.mxu0 0.0
    %1073 = vmatpush1.msra.mxu0 0.0
    %1074 = vmatprep.subr.mxu0 0.0
    %1075 = vmatpush1.msra.mxu0 0.0
    %1076 = vmatprep.subr.mxu0 0.0
    %1077 = vmatpush1.msra.mxu0 0.0
    %1078 = vmatprep.subr.mxu0 0.0
    %1079 = vmatpush1.msra.mxu0 0.0
    %1080 = vmatprep.subr.mxu0 0.0
    %1081 = vmatpush1.msra.mxu0 %v1053
    %1082 = vmatprep.subr.mxu0 0.0
    %1083 = vmatpush1.msra.mxu0 %v1052
    %1084 = vmatprep.subr.mxu0 0.0
    %1085 = vmatpush1.msra.mxu0 %v1051
    %1086 = vmatprep.subr.mxu0 0.0
    %1087 = vmatpush1.msra.mxu0 %v1050
    %1088 = vmatprep.subr.mxu0 0.0
    %1089 = vmatpush1.msra.mxu0 %v1049
    %1090 = vmatprep.subr.mxu0 0.0
    %1091 = vmatpush1.msra.mxu0 %v1048
    %1092 = vmatprep.subr.mxu0 0.0
    %1093 = vmatpush1.msra.mxu0 %v1047
    %1094 = vmatprep.subr.mxu0 0.0
    %1095 = vmatpush1.msra.mxu0 %v1046
    %1096 = vmatprep.subr.mxu0 0.0
    %1097 = vmatpush2.msra.mxu0 0.0
    %1098 = vmatprep.subr.mxu0 0.0
    %1099 = vmatpush2.msra.mxu0 0.0
    %1100 = vmatprep.subr.mxu0 0.0
    %1101 = vmatpush2.msra.mxu0 0.0
    %1102 = vmatprep.subr.mxu0 0.0
    %1103 = vmatpush2.msra.mxu0 0.0
    %1104 = vmatprep.subr.mxu0 0.0
    %1105 = vmatpush2.msra.mxu0 0.0
    %1106 = vmatprep.subr.mxu0 0.0
    %1107 = vmatpush2.msra.mxu0 0.0
    %1108 = vmatprep.subr.mxu0 0.0
    %1109 = vmatpush2.msra.mxu0 0.0
    %1110 = vmatprep.subr.mxu0 0.0
    %1111 = vmatpush2.msra.mxu0 0.0
    %1112 = vmatprep.subr.mxu0 0.0
    %1113 = vmatpush2.msra.mxu0 0.0
    %1114 = vmatprep.subr.mxu0 0.0
    %1115 = vmatpush2.msra.mxu0 0.0
    %1116 = vmatprep.subr.mxu0 0.0
    %1117 = vmatpush2.msra.mxu0 0.0
    %1118 = vmatprep.subr.mxu0 0.0
    %1119 = vmatpush2.msra.mxu0 0.0
    %1120 = vmatprep.subr.mxu0 0.0
    %1121 = vmatpush2.msra.mxu0 0.0
    %1122 = vmatprep.subr.mxu0 0.0
    %1123 = vmatpush2.msra.mxu0 0.0
    %1124 = vmatprep.subr.mxu0 0.0
    %1125 = vmatpush2.msra.mxu0 0.0
    %1126 = vmatprep.subr.mxu0 0.0
    %1127 = vmatpush2.msra.mxu0 0.0
    %1128 = vmatprep.mubr.f32.mxu0 0.0
    %1129 = vmatmul.mubr.f32.gmra.mxu0 %v1062
    %v1130 = vpop.f32.mrf.mxu0
    %v1131 = vadd.f32 %v1059, %v1130
    %v1132 = vpop.f32.mrf.mxu0
    %1133 = vdwg.mxu0
    %v1134 = vxor.u32 %v1131, 2147483648
    %v1135 = vmul.f32 %v1134, 1.442695
    %v1136 = vpow.pop %v1135
    %v1137 = vadd.f32 %v1136, 1.0
    %v1138 = vrcp.pop %v1137
    %v1139 = vmul.f32 1.0, %v1138
    %v1140 = vmax.f32 %v1131, 0.0
    %v1141 = vmul.f32 %v1139, %v1027
    %1143 = vrot.lane.b32.xlu0 %v1140, 32
    %v1144 = vpop.permute.xlu0 %1143
    %v1146 = vmul.f32 %v1139, %v1144
    %1148 = vrot.lane.b32.xlu0 %v1146, 32
    %v1149 = vpop.permute.xlu0 %1148
    %v1151 = vadd.f32 %v1141, %v1149
    %v1152 = vmax.f32 %v1151, 0.0
    %1154 = vrot.lane.b32.xlu0 %v1152, 32
    %v1155 = vpop.permute.xlu0 %1154
    %v1157 = vmul.f32 %v1139, %v1155
    %1159 = vrot.lane.b32.xlu0 %v1157, 64
    %v1160 = vpop.permute.xlu0 %1159
    %1162 = vrot.lane.b32.xlu0 %v1157, 96
    %v1163 = vpop.permute.xlu0 %1162
    %v1165 = vsel %vm61, %v1160, %v1163
    %v1166 = vld [vmem:[%s188] sm:$0xff]
    %v1167 = vld [vmem:[%s188 + $0x8] sm:$0xff]
    %v1168 = vld [vmem:[%s188 + $0x10] sm:$0xff]
    %v1169 = vld [vmem:[%s188 + $0x18] sm:$0xff]
    %v1170 = vld [vmem:[%s188 + $0x20] sm:$0xff]
    %v1171 = vld [vmem:[%s188 + $0x28] sm:$0xff]
    %v1172 = vld [vmem:[%s188 + $0x30] sm:$0xff]
    %v1173 = vld [vmem:[%s188 + $0x38] sm:$0xff]
    %v1174 = vld [vmem:[%s197] sm:$0x1]
    %v1176 = vlaneseq
    %v1177 = vshrl.u32 %v1176, 7
    %v1178 = vsub.s32 0, %v1177
    %v1179 = vrot.slane %v1174, %v1178
    %v1182 = vsel %vm78, %v1165, 0
    %1184 = vmatprep.subr.mxu0 0.0
    %1185 = vmatpush1.msra.mxu0 0.0
    %1186 = vmatprep.subr.mxu0 0.0
    %1187 = vmatpush1.msra.mxu0 0.0
    %1188 = vmatprep.subr.mxu0 0.0
    %1189 = vmatpush1.msra.mxu0 0.0
    %1190 = vmatprep.subr.mxu0 0.0
    %1191 = vmatpush1.msra.mxu0 0.0
    %1192 = vmatprep.subr.mxu0 0.0
    %1193 = vmatpush1.msra.mxu0 0.0
    %1194 = vmatprep.subr.mxu0 0.0
    %1195 = vmatpush1.msra.mxu0 0.0
    %1196 = vmatprep.subr.mxu0 0.0
    %1197 = vmatpush1.msra.mxu0 0.0
    %1198 = vmatprep.subr.mxu0 0.0
    %1199 = vmatpush1.msra.mxu0 0.0
    %1200 = vmatprep.subr.mxu0 0.0
    %1201 = vmatpush1.msra.mxu0 %v1173
    %1202 = vmatprep.subr.mxu0 0.0
    %1203 = vmatpush1.msra.mxu0 %v1172
    %1204 = vmatprep.subr.mxu0 0.0
    %1205 = vmatpush1.msra.mxu0 %v1171
    %1206 = vmatprep.subr.mxu0 0.0
    %1207 = vmatpush1.msra.mxu0 %v1170
    %1208 = vmatprep.subr.mxu0 0.0
    %1209 = vmatpush1.msra.mxu0 %v1169
    %1210 = vmatprep.subr.mxu0 0.0
    %1211 = vmatpush1.msra.mxu0 %v1168
    %1212 = vmatprep.subr.mxu0 0.0
    %1213 = vmatpush1.msra.mxu0 %v1167
    %1214 = vmatprep.subr.mxu0 0.0
    %1215 = vmatpush1.msra.mxu0 %v1166
    %1216 = vmatprep.subr.mxu0 0.0
    %1217 = vmatpush2.msra.mxu0 0.0
    %1218 = vmatprep.subr.mxu0 0.0
    %1219 = vmatpush2.msra.mxu0 0.0
    %1220 = vmatprep.subr.mxu0 0.0
    %1221 = vmatpush2.msra.mxu0 0.0
    %1222 = vmatprep.subr.mxu0 0.0
    %1223 = vmatpush2.msra.mxu0 0.0
    %1224 = vmatprep.subr.mxu0 0.0
    %1225 = vmatpush2.msra.mxu0 0.0
    %1226 = vmatprep.subr.mxu0 0.0
    %1227 = vmatpush2.msra.mxu0 0.0
    %1228 = vmatprep.subr.mxu0 0.0
    %1229 = vmatpush2.msra.mxu0 0.0
    %1230 = vmatprep.subr.mxu0 0.0
    %1231 = vmatpush2.msra.mxu0 0.0
    %1232 = vmatprep.subr.mxu0 0.0
    %1233 = vmatpush2.msra.mxu0 0.0
    %1234 = vmatprep.subr.mxu0 0.0
    %1235 = vmatpush2.msra.mxu0 0.0
    %1236 = vmatprep.subr.mxu0 0.0
    %1237 = vmatpush2.msra.mxu0 0.0
    %1238 = vmatprep.subr.mxu0 0.0
    %1239 = vmatpush2.msra.mxu0 0.0
    %1240 = vmatprep.subr.mxu0 0.0
    %1241 = vmatpush2.msra.mxu0 0.0
    %1242 = vmatprep.subr.mxu0 0.0
    %1243 = vmatpush2.msra.mxu0 0.0
    %1244 = vmatprep.subr.mxu0 0.0
    %1245 = vmatpush2.msra.mxu0 0.0
    %1246 = vmatprep.subr.mxu0 0.0
    %1247 = vmatpush2.msra.mxu0 0.0
    %1248 = vmatprep.mubr.f32.mxu0 0.0
    %1249 = vmatmul.mubr.f32.gmra.mxu0 %v1182
    %v1250 = vpop.f32.mrf.mxu0
    %v1251 = vadd.f32 %v1179, %v1250
    %v1252 = vpop.f32.mrf.mxu0
    %1253 = vdwg.mxu0
    %v1254 = vxor.u32 %v1251, 2147483648
    %v1255 = vmul.f32 %v1254, 1.442695
    %v1256 = vpow.pop %v1255
    %v1257 = vadd.f32 %v1256, 1.0
    %v1258 = vrcp.pop %v1257
    %v1259 = vmul.f32 1.0, %v1258
    %v1260 = vmax.f32 %v1251, 0.0
    %v1261 = vmul.f32 %v1259, %v1151
    %1263 = vrot.lane.b32.xlu0 %v1260, 32
    %v1264 = vpop.permute.xlu0 %1263
    %v1266 = vmul.f32 %v1259, %v1264
    %1268 = vrot.lane.b32.xlu0 %v1266, 32
    %v1269 = vpop.permute.xlu0 %1268
    %v1271 = vadd.f32 %v1261, %v1269
    %v1272 = vmax.f32 %v1271, 0.0
    %1274 = vrot.lane.b32.xlu0 %v1272, 32
    %v1275 = vpop.permute.xlu0 %1274
    %v1277 = vmul.f32 %v1259, %v1275
    %1279 = vrot.lane.b32.xlu0 %v1277, 64
    %v1280 = vpop.permute.xlu0 %1279
    %s1282 = scalar_lea.vmem [#allocation9], 8
    %1283 = vst.msk [vmem:[%s1282] sm:$0x3] %vm306, %v1280
    %s1284 = scalar_lea.vmem [#allocation4], 10
    %v1285 = vld [vmem:[%s1284] sm:$0x3]
    %1286 = vrot.lane.b32.xlu0 %v1277, 96
    %v1287 = vpop.permute.xlu0 %1286
    %v1289 = vsel %vm61, %v1285, %v1287
    %v1290 = vld [vmem:[#allocation7] sm:$0xff]
    %v1291 = vld [vmem:[#allocation7 + $0x8] sm:$0xff]
    %v1292 = vld [vmem:[#allocation7 + $0x10] sm:$0xff]
    %v1293 = vld [vmem:[#allocation7 + $0x18] sm:$0xff]
    %v1294 = vld [vmem:[#allocation7 + $0x20] sm:$0xff]
    %v1295 = vld [vmem:[#allocation7 + $0x28] sm:$0xff]
    %v1296 = vld [vmem:[#allocation7 + $0x30] sm:$0xff]
    %v1297 = vld [vmem:[#allocation7 + $0x38] sm:$0xff]
    %v1298 = vld [vmem:[%s2] sm:$0x1]
    %v1300 = vlaneseq
    %v1301 = vshrl.u32 %v1300, 7
    %v1302 = vsub.s32 0, %v1301
    %v1303 = vrot.slane %v1298, %v1302
    %v1306 = vsel %vm78, %v1289, 0
    %1308 = vmatprep.subr.mxu0 0.0
    %1309 = vmatpush1.msra.mxu0 0.0
    %1310 = vmatprep.subr.mxu0 0.0
    %1311 = vmatpush1.msra.mxu0 0.0
    %1312 = vmatprep.subr.mxu0 0.0
    %1313 = vmatpush1.msra.mxu0 0.0
    %1314 = vmatprep.subr.mxu0 0.0
    %1315 = vmatpush1.msra.mxu0 0.0
    %1316 = vmatprep.subr.mxu0 0.0
    %1317 = vmatpush1.msra.mxu0 0.0
    %1318 = vmatprep.subr.mxu0 0.0
    %1319 = vmatpush1.msra.mxu0 0.0
    %1320 = vmatprep.subr.mxu0 0.0
    %1321 = vmatpush1.msra.mxu0 0.0
    %1322 = vmatprep.subr.mxu0 0.0
    %1323 = vmatpush1.msra.mxu0 0.0
    %1324 = vmatprep.subr.mxu0 0.0
    %1325 = vmatpush1.msra.mxu0 %v1297
    %1326 = vmatprep.subr.mxu0 0.0
    %1327 = vmatpush1.msra.mxu0 %v1296
    %1328 = vmatprep.subr.mxu0 0.0
    %1329 = vmatpush1.msra.mxu0 %v1295
    %1330 = vmatprep.subr.mxu0 0.0
    %1331 = vmatpush1.msra.mxu0 %v1294
    %1332 = vmatprep.subr.mxu0 0.0
    %1333 = vmatpush1.msra.mxu0 %v1293
    %1334 = vmatprep.subr.mxu0 0.0
    %1335 = vmatpush1.msra.mxu0 %v1292
    %1336 = vmatprep.subr.mxu0 0.0
    %1337 = vmatpush1.msra.mxu0 %v1291
    %1338 = vmatprep.subr.mxu0 0.0
    %1339 = vmatpush1.msra.mxu0 %v1290
    %1340 = vmatprep.subr.mxu0 0.0
    %1341 = vmatpush2.msra.mxu0 0.0
    %1342 = vmatprep.subr.mxu0 0.0
    %1343 = vmatpush2.msra.mxu0 0.0
    %1344 = vmatprep.subr.mxu0 0.0
    %1345 = vmatpush2.msra.mxu0 0.0
    %1346 = vmatprep.subr.mxu0 0.0
    %1347 = vmatpush2.msra.mxu0 0.0
    %1348 = vmatprep.subr.mxu0 0.0
    %1349 = vmatpush2.msra.mxu0 0.0
    %1350 = vmatprep.subr.mxu0 0.0
    %1351 = vmatpush2.msra.mxu0 0.0
    %1352 = vmatprep.subr.mxu0 0.0
    %1353 = vmatpush2.msra.mxu0 0.0
    %1354 = vmatprep.subr.mxu0 0.0
    %1355 = vmatpush2.msra.mxu0 0.0
    %1356 = vmatprep.subr.mxu0 0.0
    %1357 = vmatpush2.msra.mxu0 0.0
    %1358 = vmatprep.subr.mxu0 0.0
    %1359 = vmatpush2.msra.mxu0 0.0
    %1360 = vmatprep.subr.mxu0 0.0
    %1361 = vmatpush2.msra.mxu0 0.0
    %1362 = vmatprep.subr.mxu0 0.0
    %1363 = vmatpush2.msra.mxu0 0.0
    %1364 = vmatprep.subr.mxu0 0.0
    %1365 = vmatpush2.msra.mxu0 0.0
    %1366 = vmatprep.subr.mxu0 0.0
    %1367 = vmatpush2.msra.mxu0 0.0
    %1368 = vmatprep.subr.mxu0 0.0
    %1369 = vmatpush2.msra.mxu0 0.0
    %1370 = vmatprep.subr.mxu0 0.0
    %1371 = vmatpush2.msra.mxu0 0.0
    %1372 = vmatprep.mubr.f32.mxu0 0.0
    %1373 = vmatmul.mubr.f32.gmra.mxu0 %v1306
    %v1374 = vpop.f32.mrf.mxu0
    %v1375 = vadd.f32 %v1303, %v1374
    %v1376 = vpop.f32.mrf.mxu0
    %1377 = vdwg.mxu0
    %v1378 = vxor.u32 %v1375, 2147483648
    %v1379 = vmul.f32 %v1378, 1.442695
    %v1380 = vpow.pop %v1379
    %v1381 = vadd.f32 %v1380, 1.0
    %v1382 = vrcp.pop %v1381
    %v1383 = vmul.f32 1.0, %v1382
    %v1384 = vmax.f32 %v1375, 0.0
    %v1385 = vmul.f32 %v1383, %v1271
    %1387 = vrot.lane.b32.xlu0 %v1384, 32
    %v1388 = vpop.permute.xlu0 %1387
    %v1390 = vmul.f32 %v1383, %v1388
    %1392 = vrot.lane.b32.xlu0 %v1390, 32
    %v1393 = vpop.permute.xlu0 %1392
    %v1395 = vadd.f32 %v1385, %v1393
    %v1396 = vmax.f32 %v1395, 0.0
    %1398 = vrot.lane.b32.xlu0 %v1396, 32
    %v1399 = vpop.permute.xlu0 %1398
    %v1401 = vmul.f32 %v1383, %v1399
    %1403 = vrot.lane.b32.xlu0 %v1401, 64
    %v1404 = vpop.permute.xlu0 %1403
    %1406 = vrot.lane.b32.xlu0 %v1401, 96
    %v1407 = vpop.permute.xlu0 %1406
    %v1409 = vsel %vm61, %v1404, %v1407
    %v1410 = vld [vmem:[%s188] sm:$0xff]
    %v1411 = vld [vmem:[%s188 + $0x8] sm:$0xff]
    %v1412 = vld [vmem:[%s188 + $0x10] sm:$0xff]
    %v1413 = vld [vmem:[%s188 + $0x18] sm:$0xff]
    %v1414 = vld [vmem:[%s188 + $0x20] sm:$0xff]
    %v1415 = vld [vmem:[%s188 + $0x28] sm:$0xff]
    %v1416 = vld [vmem:[%s188 + $0x30] sm:$0xff]
    %v1417 = vld [vmem:[%s188 + $0x38] sm:$0xff]
    %v1418 = vld [vmem:[%s197] sm:$0x1]
    %v1420 = vlaneseq
    %v1421 = vshrl.u32 %v1420, 7
    %v1422 = vsub.s32 0, %v1421
    %v1423 = vrot.slane %v1418, %v1422
    %v1426 = vsel %vm78, %v1409, 0
    %1428 = vmatprep.subr.mxu0 0.0
    %1429 = vmatpush1.msra.mxu0 0.0
    %1430 = vmatprep.subr.mxu0 0.0
    %1431 = vmatpush1.msra.mxu0 0.0
    %1432 = vmatprep.subr.mxu0 0.0
    %1433 = vmatpush1.msra.mxu0 0.0
    %1434 = vmatprep.subr.mxu0 0.0
    %1435 = vmatpush1.msra.mxu0 0.0
    %1436 = vmatprep.subr.mxu0 0.0
    %1437 = vmatpush1.msra.mxu0 0.0
    %1438 = vmatprep.subr.mxu0 0.0
    %1439 = vmatpush1.msra.mxu0 0.0
    %1440 = vmatprep.subr.mxu0 0.0
    %1441 = vmatpush1.msra.mxu0 0.0
    %1442 = vmatprep.subr.mxu0 0.0
    %1443 = vmatpush1.msra.mxu0 0.0
    %1444 = vmatprep.subr.mxu0 0.0
    %1445 = vmatpush1.msra.mxu0 %v1417
    %1446 = vmatprep.subr.mxu0 0.0
    %1447 = vmatpush1.msra.mxu0 %v1416
    %1448 = vmatprep.subr.mxu0 0.0
    %1449 = vmatpush1.msra.mxu0 %v1415
    %1450 = vmatprep.subr.mxu0 0.0
    %1451 = vmatpush1.msra.mxu0 %v1414
    %1452 = vmatprep.subr.mxu0 0.0
    %1453 = vmatpush1.msra.mxu0 %v1413
    %1454 = vmatprep.subr.mxu0 0.0
    %1455 = vmatpush1.msra.mxu0 %v1412
    %1456 = vmatprep.subr.mxu0 0.0
    %1457 = vmatpush1.msra.mxu0 %v1411
    %1458 = vmatprep.subr.mxu0 0.0
    %1459 = vmatpush1.msra.mxu0 %v1410
    %1460 = vmatprep.subr.mxu0 0.0
    %1461 = vmatpush2.msra.mxu0 0.0
    %1462 = vmatprep.subr.mxu0 0.0
    %1463 = vmatpush2.msra.mxu0 0.0
    %1464 = vmatprep.subr.mxu0 0.0
    %1465 = vmatpush2.msra.mxu0 0.0
    %1466 = vmatprep.subr.mxu0 0.0
    %1467 = vmatpush2.msra.mxu0 0.0
    %1468 = vmatprep.subr.mxu0 0.0
    %1469 = vmatpush2.msra.mxu0 0.0
    %1470 = vmatprep.subr.mxu0 0.0
    %1471 = vmatpush2.msra.mxu0 0.0
    %1472 = vmatprep.subr.mxu0 0.0
    %1473 = vmatpush2.msra.mxu0 0.0
    %1474 = vmatprep.subr.mxu0 0.0
    %1475 = vmatpush2.msra.mxu0 0.0
    %1476 = vmatprep.subr.mxu0 0.0
    %1477 = vmatpush2.msra.mxu0 0.0
    %1478 = vmatprep.subr.mxu0 0.0
    %1479 = vmatpush2.msra.mxu0 0.0
    %1480 = vmatprep.subr.mxu0 0.0
    %1481 = vmatpush2.msra.mxu0 0.0
    %1482 = vmatprep.subr.mxu0 0.0
    %1483 = vmatpush2.msra.mxu0 0.0
    %1484 = vmatprep.subr.mxu0 0.0
    %1485 = vmatpush2.msra.mxu0 0.0
    %1486 = vmatprep.subr.mxu0 0.0
    %1487 = vmatpush2.msra.mxu0 0.0
    %1488 = vmatprep.subr.mxu0 0.0
    %1489 = vmatpush2.msra.mxu0 0.0
    %1490 = vmatprep.subr.mxu0 0.0
    %1491 = vmatpush2.msra.mxu0 0.0
    %1492 = vmatprep.mubr.f32.mxu0 0.0
    %1493 = vmatmul.mubr.f32.gmra.mxu0 %v1426
    %v1494 = vpop.f32.mrf.mxu0
    %v1495 = vadd.f32 %v1423, %v1494
    %v1496 = vpop.f32.mrf.mxu0
    %1497 = vdwg.mxu0
    %v1498 = vxor.u32 %v1495, 2147483648
    %v1499 = vmul.f32 %v1498, 1.442695
    %v1500 = vpow.pop %v1499
    %v1501 = vadd.f32 %v1500, 1.0
    %v1502 = vrcp.pop %v1501
    %v1503 = vmul.f32 1.0, %v1502
    %v1504 = vmax.f32 %v1495, 0.0
    %v1505 = vmul.f32 %v1503, %v1395
    %1507 = vrot.lane.b32.xlu0 %v1504, 32
    %v1508 = vpop.permute.xlu0 %1507
    %v1510 = vmul.f32 %v1503, %v1508
    %1512 = vrot.lane.b32.xlu0 %v1510, 32
    %v1513 = vpop.permute.xlu0 %1512
    %v1515 = vadd.f32 %v1505, %v1513
    %v1516 = vmax.f32 %v1515, 0.0
    %1518 = vrot.lane.b32.xlu0 %v1516, 32
    %v1519 = vpop.permute.xlu0 %1518
    %v1521 = vmul.f32 %v1503, %v1519
    %1523 = vrot.lane.b32.xlu0 %v1521, 64
    %v1524 = vpop.permute.xlu0 %1523
    %s1526 = scalar_lea.vmem [#allocation9], 10
    %1527 = vst.msk [vmem:[%s1526] sm:$0x3] %vm306, %v1524
    %s1528 = scalar_lea.vmem [#allocation4], 12
    %v1529 = vld [vmem:[%s1528] sm:$0x3]
    %1530 = vrot.lane.b32.xlu0 %v1521, 96
    %v1531 = vpop.permute.xlu0 %1530
    %v1533 = vsel %vm61, %v1529, %v1531
    %v1534 = vld [vmem:[#allocation7] sm:$0xff]
    %v1535 = vld [vmem:[#allocation7 + $0x8] sm:$0xff]
    %v1536 = vld [vmem:[#allocation7 + $0x10] sm:$0xff]
    %v1537 = vld [vmem:[#allocation7 + $0x18] sm:$0xff]
    %v1538 = vld [vmem:[#allocation7 + $0x20] sm:$0xff]
    %v1539 = vld [vmem:[#allocation7 + $0x28] sm:$0xff]
    %v1540 = vld [vmem:[#allocation7 + $0x30] sm:$0xff]
    %v1541 = vld [vmem:[#allocation7 + $0x38] sm:$0xff]
    %v1542 = vld [vmem:[%s2] sm:$0x1]
    %v1544 = vlaneseq
    %v1545 = vshrl.u32 %v1544, 7
    %v1546 = vsub.s32 0, %v1545
    %v1547 = vrot.slane %v1542, %v1546
    %v1550 = vsel %vm78, %v1533, 0
    %1552 = vmatprep.subr.mxu0 0.0
    %1553 = vmatpush1.msra.mxu0 0.0
    %1554 = vmatprep.subr.mxu0 0.0
    %1555 = vmatpush1.msra.mxu0 0.0
    %1556 = vmatprep.subr.mxu0 0.0
    %1557 = vmatpush1.msra.mxu0 0.0
    %1558 = vmatprep.subr.mxu0 0.0
    %1559 = vmatpush1.msra.mxu0 0.0
    %1560 = vmatprep.subr.mxu0 0.0
    %1561 = vmatpush1.msra.mxu0 0.0
    %1562 = vmatprep.subr.mxu0 0.0
    %1563 = vmatpush1.msra.mxu0 0.0
    %1564 = vmatprep.subr.mxu0 0.0
    %1565 = vmatpush1.msra.mxu0 0.0
    %1566 = vmatprep.subr.mxu0 0.0
    %1567 = vmatpush1.msra.mxu0 0.0
    %1568 = vmatprep.subr.mxu0 0.0
    %1569 = vmatpush1.msra.mxu0 %v1541
    %1570 = vmatprep.subr.mxu0 0.0
    %1571 = vmatpush1.msra.mxu0 %v1540
    %1572 = vmatprep.subr.mxu0 0.0
    %1573 = vmatpush1.msra.mxu0 %v1539
    %1574 = vmatprep.subr.mxu0 0.0
    %1575 = vmatpush1.msra.mxu0 %v1538
    %1576 = vmatprep.subr.mxu0 0.0
    %1577 = vmatpush1.msra.mxu0 %v1537
    %1578 = vmatprep.subr.mxu0 0.0
    %1579 = vmatpush1.msra.mxu0 %v1536
    %1580 = vmatprep.subr.mxu0 0.0
    %1581 = vmatpush1.msra.mxu0 %v1535
    %1582 = vmatprep.subr.mxu0 0.0
    %1583 = vmatpush1.msra.mxu0 %v1534
    %1584 = vmatprep.subr.mxu0 0.0
    %1585 = vmatpush2.msra.mxu0 0.0
    %1586 = vmatprep.subr.mxu0 0.0
    %1587 = vmatpush2.msra.mxu0 0.0
    %1588 = vmatprep.subr.mxu0 0.0
    %1589 = vmatpush2.msra.mxu0 0.0
    %1590 = vmatprep.subr.mxu0 0.0
    %1591 = vmatpush2.msra.mxu0 0.0
    %1592 = vmatprep.subr.mxu0 0.0
    %1593 = vmatpush2.msra.mxu0 0.0
    %1594 = vmatprep.subr.mxu0 0.0
    %1595 = vmatpush2.msra.mxu0 0.0
    %1596 = vmatprep.subr.mxu0 0.0
    %1597 = vmatpush2.msra.mxu0 0.0
    %1598 = vmatprep.subr.mxu0 0.0
    %1599 = vmatpush2.msra.mxu0 0.0
    %1600 = vmatprep.subr.mxu0 0.0
    %1601 = vmatpush2.msra.mxu0 0.0
    %1602 = vmatprep.subr.mxu0 0.0
    %1603 = vmatpush2.msra.mxu0 0.0
    %1604 = vmatprep.subr.mxu0 0.0
    %1605 = vmatpush2.msra.mxu0 0.0
    %1606 = vmatprep.subr.mxu0 0.0
    %1607 = vmatpush2.msra.mxu0 0.0
    %1608 = vmatprep.subr.mxu0 0.0
    %1609 = vmatpush2.msra.mxu0 0.0
    %1610 = vmatprep.subr.mxu0 0.0
    %1611 = vmatpush2.msra.mxu0 0.0
    %1612 = vmatprep.subr.mxu0 0.0
    %1613 = vmatpush2.msra.mxu0 0.0
    %1614 = vmatprep.subr.mxu0 0.0
    %1615 = vmatpush2.msra.mxu0 0.0
    %1616 = vmatprep.mubr.f32.mxu0 0.0
    %1617 = vmatmul.mubr.f32.gmra.mxu0 %v1550
    %v1618 = vpop.f32.mrf.mxu0
    %v1619 = vadd.f32 %v1547, %v1618
    %v1620 = vpop.f32.mrf.mxu0
    %1621 = vdwg.mxu0
    %v1622 = vxor.u32 %v1619, 2147483648
    %v1623 = vmul.f32 %v1622, 1.442695
    %v1624 = vpow.pop %v1623
    %v1625 = vadd.f32 %v1624, 1.0
    %v1626 = vrcp.pop %v1625
    %v1627 = vmul.f32 1.0, %v1626
    %v1628 = vmax.f32 %v1619, 0.0
    %v1629 = vmul.f32 %v1627, %v1515
    %1631 = vrot.lane.b32.xlu0 %v1628, 32
    %v1632 = vpop.permute.xlu0 %1631
    %v1634 = vmul.f32 %v1627, %v1632
    %1636 = vrot.lane.b32.xlu0 %v1634, 32
    %v1637 = vpop.permute.xlu0 %1636
    %v1639 = vadd.f32 %v1629, %v1637
    %v1640 = vmax.f32 %v1639, 0.0
    %1642 = vrot.lane.b32.xlu0 %v1640, 32
    %v1643 = vpop.permute.xlu0 %1642
    %v1645 = vmul.f32 %v1627, %v1643
    %1647 = vrot.lane.b32.xlu0 %v1645, 64
    %v1648 = vpop.permute.xlu0 %1647
    %1650 = vrot.lane.b32.xlu0 %v1645, 96
    %v1651 = vpop.permute.xlu0 %1650
    %v1653 = vsel %vm61, %v1648, %v1651
    %v1654 = vld [vmem:[%s188] sm:$0xff]
    %v1655 = vld [vmem:[%s188 + $0x8] sm:$0xff]
    %v1656 = vld [vmem:[%s188 + $0x10] sm:$0xff]
    %v1657 = vld [vmem:[%s188 + $0x18] sm:$0xff]
    %v1658 = vld [vmem:[%s188 + $0x20] sm:$0xff]
    %v1659 = vld [vmem:[%s188 + $0x28] sm:$0xff]
    %v1660 = vld [vmem:[%s188 + $0x30] sm:$0xff]
    %v1661 = vld [vmem:[%s188 + $0x38] sm:$0xff]
    %v1662 = vld [vmem:[%s197] sm:$0x1]
    %v1664 = vlaneseq
    %v1665 = vshrl.u32 %v1664, 7
    %v1666 = vsub.s32 0, %v1665
    %v1667 = vrot.slane %v1662, %v1666
    %v1670 = vsel %vm78, %v1653, 0
    %1672 = vmatprep.subr.mxu0 0.0
    %1673 = vmatpush1.msra.mxu0 0.0
    %1674 = vmatprep.subr.mxu0 0.0
    %1675 = vmatpush1.msra.mxu0 0.0
    %1676 = vmatprep.subr.mxu0 0.0
    %1677 = vmatpush1.msra.mxu0 0.0
    %1678 = vmatprep.subr.mxu0 0.0
    %1679 = vmatpush1.msra.mxu0 0.0
    %1680 = vmatprep.subr.mxu0 0.0
    %1681 = vmatpush1.msra.mxu0 0.0
    %1682 = vmatprep.subr.mxu0 0.0
    %1683 = vmatpush1.msra.mxu0 0.0
    %1684 = vmatprep.subr.mxu0 0.0
    %1685 = vmatpush1.msra.mxu0 0.0
    %1686 = vmatprep.subr.mxu0 0.0
    %1687 = vmatpush1.msra.mxu0 0.0
    %1688 = vmatprep.subr.mxu0 0.0
    %1689 = vmatpush1.msra.mxu0 %v1661
    %1690 = vmatprep.subr.mxu0 0.0
    %1691 = vmatpush1.msra.mxu0 %v1660
    %1692 = vmatprep.subr.mxu0 0.0
    %1693 = vmatpush1.msra.mxu0 %v1659
    %1694 = vmatprep.subr.mxu0 0.0
    %1695 = vmatpush1.msra.mxu0 %v1658
    %1696 = vmatprep.subr.mxu0 0.0
    %1697 = vmatpush1.msra.mxu0 %v1657
    %1698 = vmatprep.subr.mxu0 0.0
    %1699 = vmatpush1.msra.mxu0 %v1656
    %1700 = vmatprep.subr.mxu0 0.0
    %1701 = vmatpush1.msra.mxu0 %v1655
    %1702 = vmatprep.subr.mxu0 0.0
    %1703 = vmatpush1.msra.mxu0 %v1654
    %1704 = vmatprep.subr.mxu0 0.0
    %1705 = vmatpush2.msra.mxu0 0.0
    %1706 = vmatprep.subr.mxu0 0.0
    %1707 = vmatpush2.msra.mxu0 0.0
    %1708 = vmatprep.subr.mxu0 0.0
    %1709 = vmatpush2.msra.mxu0 0.0
    %1710 = vmatprep.subr.mxu0 0.0
    %1711 = vmatpush2.msra.mxu0 0.0
    %1712 = vmatprep.subr.mxu0 0.0
    %1713 = vmatpush2.msra.mxu0 0.0
    %1714 = vmatprep.subr.mxu0 0.0
    %1715 = vmatpush2.msra.mxu0 0.0
    %1716 = vmatprep.subr.mxu0 0.0
    %1717 = vmatpush2.msra.mxu0 0.0
    %1718 = vmatprep.subr.mxu0 0.0
    %1719 = vmatpush2.msra.mxu0 0.0
    %1720 = vmatprep.subr.mxu0 0.0
    %1721 = vmatpush2.msra.mxu0 0.0
    %1722 = vmatprep.subr.mxu0 0.0
    %1723 = vmatpush2.msra.mxu0 0.0
    %1724 = vmatprep.subr.mxu0 0.0
    %1725 = vmatpush2.msra.mxu0 0.0
    %1726 = vmatprep.subr.mxu0 0.0
    %1727 = vmatpush2.msra.mxu0 0.0
    %1728 = vmatprep.subr.mxu0 0.0
    %1729 = vmatpush2.msra.mxu0 0.0
    %1730 = vmatprep.subr.mxu0 0.0
    %1731 = vmatpush2.msra.mxu0 0.0
    %1732 = vmatprep.subr.mxu0 0.0
    %1733 = vmatpush2.msra.mxu0 0.0
    %1734 = vmatprep.subr.mxu0 0.0
    %1735 = vmatpush2.msra.mxu0 0.0
    %1736 = vmatprep.mubr.f32.mxu0 0.0
    %1737 = vmatmul.mubr.f32.gmra.mxu0 %v1670
    %v1738 = vpop.f32.mrf.mxu0
    %v1739 = vadd.f32 %v1667, %v1738
    %v1740 = vpop.f32.mrf.mxu0
    %1741 = vdwg.mxu0
    %v1742 = vxor.u32 %v1739, 2147483648
    %v1743 = vmul.f32 %v1742, 1.442695
    %v1744 = vpow.pop %v1743
    %v1745 = vadd.f32 %v1744, 1.0
    %v1746 = vrcp.pop %v1745
    %v1747 = vmul.f32 1.0, %v1746
    %v1748 = vmax.f32 %v1739, 0.0
    %v1749 = vmul.f32 %v1747, %v1639
    %1751 = vrot.lane.b32.xlu0 %v1748, 32
    %v1752 = vpop.permute.xlu0 %1751
    %v1754 = vmul.f32 %v1747, %v1752
    %1756 = vrot.lane.b32.xlu0 %v1754, 32
    %v1757 = vpop.permute.xlu0 %1756
    %v1759 = vadd.f32 %v1749, %v1757
    %v1760 = vmax.f32 %v1759, 0.0
    %1762 = vrot.lane.b32.xlu0 %v1760, 32
    %v1763 = vpop.permute.xlu0 %1762
    %v1765 = vmul.f32 %v1747, %v1763
    %1767 = vrot.lane.b32.xlu0 %v1765, 64
    %v1768 = vpop.permute.xlu0 %1767
    %s1770 = scalar_lea.vmem [#allocation9], 12
    %1771 = vst.msk [vmem:[%s1770] sm:$0x3] %vm306, %v1768
    %s1772 = scalar_lea.vmem [#allocation4], 14
    %v1773 = vld [vmem:[%s1772] sm:$0x3]
    %1774 = vrot.lane.b32.xlu0 %v1765, 96
    %v1775 = vpop.permute.xlu0 %1774
    %v1777 = vsel %vm61, %v1773, %v1775
    %v1778 = vld [vmem:[#allocation7] sm:$0xff]
    %v1779 = vld [vmem:[#allocation7 + $0x8] sm:$0xff]
    %v1780 = vld [vmem:[#allocation7 + $0x10] sm:$0xff]
    %v1781 = vld [vmem:[#allocation7 + $0x18] sm:$0xff]
    %v1782 = vld [vmem:[#allocation7 + $0x20] sm:$0xff]
    %v1783 = vld [vmem:[#allocation7 + $0x28] sm:$0xff]
    %v1784 = vld [vmem:[#allocation7 + $0x30] sm:$0xff]
    %v1785 = vld [vmem:[#allocation7 + $0x38] sm:$0xff]
    %v1786 = vld [vmem:[%s2] sm:$0x1]
    %v1788 = vlaneseq
    %v1789 = vshrl.u32 %v1788, 7
    %v1790 = vsub.s32 0, %v1789
    %v1791 = vrot.slane %v1786, %v1790
    %v1794 = vsel %vm78, %v1777, 0
    %1796 = vmatprep.subr.mxu0 0.0
    %1797 = vmatpush1.msra.mxu0 0.0
    %1798 = vmatprep.subr.mxu0 0.0
    %1799 = vmatpush1.msra.mxu0 0.0
    %1800 = vmatprep.subr.mxu0 0.0
    %1801 = vmatpush1.msra.mxu0 0.0
    %1802 = vmatprep.subr.mxu0 0.0
    %1803 = vmatpush1.msra.mxu0 0.0
    %1804 = vmatprep.subr.mxu0 0.0
    %1805 = vmatpush1.msra.mxu0 0.0
    %1806 = vmatprep.subr.mxu0 0.0
    %1807 = vmatpush1.msra.mxu0 0.0
    %1808 = vmatprep.subr.mxu0 0.0
    %1809 = vmatpush1.msra.mxu0 0.0
    %1810 = vmatprep.subr.mxu0 0.0
    %1811 = vmatpush1.msra.mxu0 0.0
    %1812 = vmatprep.subr.mxu0 0.0
    %1813 = vmatpush1.msra.mxu0 %v1785
    %1814 = vmatprep.subr.mxu0 0.0
    %1815 = vmatpush1.msra.mxu0 %v1784
    %1816 = vmatprep.subr.mxu0 0.0
    %1817 = vmatpush1.msra.mxu0 %v1783
    %1818 = vmatprep.subr.mxu0 0.0
    %1819 = vmatpush1.msra.mxu0 %v1782
    %1820 = vmatprep.subr.mxu0 0.0
    %1821 = vmatpush1.msra.mxu0 %v1781
    %1822 = vmatprep.subr.mxu0 0.0
    %1823 = vmatpush1.msra.mxu0 %v1780
    %1824 = vmatprep.subr.mxu0 0.0
    %1825 = vmatpush1.msra.mxu0 %v1779
    %1826 = vmatprep.subr.mxu0 0.0
    %1827 = vmatpush1.msra.mxu0 %v1778
    %1828 = vmatprep.subr.mxu0 0.0
    %1829 = vmatpush2.msra.mxu0 0.0
    %1830 = vmatprep.subr.mxu0 0.0
    %1831 = vmatpush2.msra.mxu0 0.0
    %1832 = vmatprep.subr.mxu0 0.0
    %1833 = vmatpush2.msra.mxu0 0.0
    %1834 = vmatprep.subr.mxu0 0.0
    %1835 = vmatpush2.msra.mxu0 0.0
    %1836 = vmatprep.subr.mxu0 0.0
    %1837 = vmatpush2.msra.mxu0 0.0
    %1838 = vmatprep.subr.mxu0 0.0
    %1839 = vmatpush2.msra.mxu0 0.0
    %1840 = vmatprep.subr.mxu0 0.0
    %1841 = vmatpush2.msra.mxu0 0.0
    %1842 = vmatprep.subr.mxu0 0.0
    %1843 = vmatpush2.msra.mxu0 0.0
    %1844 = vmatprep.subr.mxu0 0.0
    %1845 = vmatpush2.msra.mxu0 0.0
    %1846 = vmatprep.subr.mxu0 0.0
    %1847 = vmatpush2.msra.mxu0 0.0
    %1848 = vmatprep.subr.mxu0 0.0
    %1849 = vmatpush2.msra.mxu0 0.0
    %1850 = vmatprep.subr.mxu0 0.0
    %1851 = vmatpush2.msra.mxu0 0.0
    %1852 = vmatprep.subr.mxu0 0.0
    %1853 = vmatpush2.msra.mxu0 0.0
    %1854 = vmatprep.subr.mxu0 0.0
    %1855 = vmatpush2.msra.mxu0 0.0
    %1856 = vmatprep.subr.mxu0 0.0
    %1857 = vmatpush2.msra.mxu0 0.0
    %1858 = vmatprep.subr.mxu0 0.0
    %1859 = vmatpush2.msra.mxu0 0.0
    %1860 = vmatprep.mubr.f32.mxu0 0.0
    %1861 = vmatmul.mubr.f32.gmra.mxu0 %v1794
    %v1862 = vpop.f32.mrf.mxu0
    %v1863 = vadd.f32 %v1791, %v1862
    %v1864 = vpop.f32.mrf.mxu0
    %1865 = vdwg.mxu0
    %v1866 = vxor.u32 %v1863, 2147483648
    %v1867 = vmul.f32 %v1866, 1.442695
    %v1868 = vpow.pop %v1867
    %v1869 = vadd.f32 %v1868, 1.0
    %v1870 = vrcp.pop %v1869
    %v1871 = vmul.f32 1.0, %v1870
    %v1872 = vmax.f32 %v1863, 0.0
    %v1873 = vmul.f32 %v1871, %v1759
    %1875 = vrot.lane.b32.xlu0 %v1872, 32
    %v1876 = vpop.permute.xlu0 %1875
    %v1878 = vmul.f32 %v1871, %v1876
    %1880 = vrot.lane.b32.xlu0 %v1878, 32
    %v1881 = vpop.permute.xlu0 %1880
    %v1883 = vadd.f32 %v1873, %v1881
    %v1884 = vmax.f32 %v1883, 0.0
    %1886 = vrot.lane.b32.xlu0 %v1884, 32
    %v1887 = vpop.permute.xlu0 %1886
    %v1889 = vmul.f32 %v1871, %v1887
    %1891 = vrot.lane.b32.xlu0 %v1889, 64
    %v1892 = vpop.permute.xlu0 %1891
    %1894 = vrot.lane.b32.xlu0 %v1889, 96
    %v1895 = vpop.permute.xlu0 %1894
    %v1897 = vsel %vm61, %v1892, %v1895
    %v1898 = vld [vmem:[%s188] sm:$0xff]
    %v1899 = vld [vmem:[%s188 + $0x8] sm:$0xff]
    %v1900 = vld [vmem:[%s188 + $0x10] sm:$0xff]
    %v1901 = vld [vmem:[%s188 + $0x18] sm:$0xff]
    %v1902 = vld [vmem:[%s188 + $0x20] sm:$0xff]
    %v1903 = vld [vmem:[%s188 + $0x28] sm:$0xff]
    %v1904 = vld [vmem:[%s188 + $0x30] sm:$0xff]
    %v1905 = vld [vmem:[%s188 + $0x38] sm:$0xff]
    %v1906 = vld [vmem:[%s197] sm:$0x1]
    %v1908 = vlaneseq
    %v1909 = vshrl.u32 %v1908, 7
    %v1910 = vsub.s32 0, %v1909
    %v1911 = vrot.slane %v1906, %v1910
    %v1914 = vsel %vm78, %v1897, 0
    %1916 = vmatprep.subr.mxu0 0.0
    %1917 = vmatpush1.msra.mxu0 0.0
    %1918 = vmatprep.subr.mxu0 0.0
    %1919 = vmatpush1.msra.mxu0 0.0
    %1920 = vmatprep.subr.mxu0 0.0
    %1921 = vmatpush1.msra.mxu0 0.0
    %1922 = vmatprep.subr.mxu0 0.0
    %1923 = vmatpush1.msra.mxu0 0.0
    %1924 = vmatprep.subr.mxu0 0.0
    %1925 = vmatpush1.msra.mxu0 0.0
    %1926 = vmatprep.subr.mxu0 0.0
    %1927 = vmatpush1.msra.mxu0 0.0
    %1928 = vmatprep.subr.mxu0 0.0
    %1929 = vmatpush1.msra.mxu0 0.0
    %1930 = vmatprep.subr.mxu0 0.0
    %1931 = vmatpush1.msra.mxu0 0.0
    %1932 = vmatprep.subr.mxu0 0.0
    %1933 = vmatpush1.msra.mxu0 %v1905
    %1934 = vmatprep.subr.mxu0 0.0
    %1935 = vmatpush1.msra.mxu0 %v1904
    %1936 = vmatprep.subr.mxu0 0.0
    %1937 = vmatpush1.msra.mxu0 %v1903
    %1938 = vmatprep.subr.mxu0 0.0
    %1939 = vmatpush1.msra.mxu0 %v1902
    %1940 = vmatprep.subr.mxu0 0.0
    %1941 = vmatpush1.msra.mxu0 %v1901
    %1942 = vmatprep.subr.mxu0 0.0
    %1943 = vmatpush1.msra.mxu0 %v1900
    %1944 = vmatprep.subr.mxu0 0.0
    %1945 = vmatpush1.msra.mxu0 %v1899
    %1946 = vmatprep.subr.mxu0 0.0
    %1947 = vmatpush1.msra.mxu0 %v1898
    %1948 = vmatprep.subr.mxu0 0.0
    %1949 = vmatpush2.msra.mxu0 0.0
    %1950 = vmatprep.subr.mxu0 0.0
    %1951 = vmatpush2.msra.mxu0 0.0
    %1952 = vmatprep.subr.mxu0 0.0
    %1953 = vmatpush2.msra.mxu0 0.0
    %1954 = vmatprep.subr.mxu0 0.0
    %1955 = vmatpush2.msra.mxu0 0.0
    %1956 = vmatprep.subr.mxu0 0.0
    %1957 = vmatpush2.msra.mxu0 0.0
    %1958 = vmatprep.subr.mxu0 0.0
    %1959 = vmatpush2.msra.mxu0 0.0
    %1960 = vmatprep.subr.mxu0 0.0
    %1961 = vmatpush2.msra.mxu0 0.0
    %1962 = vmatprep.subr.mxu0 0.0
    %1963 = vmatpush2.msra.mxu0 0.0
    %1964 = vmatprep.subr.mxu0 0.0
    %1965 = vmatpush2.msra.mxu0 0.0
    %1966 = vmatprep.subr.mxu0 0.0
    %1967 = vmatpush2.msra.mxu0 0.0
    %1968 = vmatprep.subr.mxu0 0.0
    %1969 = vmatpush2.msra.mxu0 0.0
    %1970 = vmatprep.subr.mxu0 0.0
    %1971 = vmatpush2.msra.mxu0 0.0
    %1972 = vmatprep.subr.mxu0 0.0
    %1973 = vmatpush2.msra.mxu0 0.0
    %1974 = vmatprep.subr.mxu0 0.0
    %1975 = vmatpush2.msra.mxu0 0.0
    %1976 = vmatprep.subr.mxu0 0.0
    %1977 = vmatpush2.msra.mxu0 0.0
    %1978 = vmatprep.subr.mxu0 0.0
    %1979 = vmatpush2.msra.mxu0 0.0
    %1980 = vmatprep.mubr.f32.mxu0 0.0
    %1981 = vmatmul.mubr.f32.gmra.mxu0 %v1914
    %v1982 = vpop.f32.mrf.mxu0
    %v1983 = vadd.f32 %v1911, %v1982
    %v1984 = vpop.f32.mrf.mxu0
    %1985 = vdwg.mxu0
    %v1986 = vxor.u32 %v1983, 2147483648
    %v1987 = vmul.f32 %v1986, 1.442695
    %v1988 = vpow.pop %v1987
    %v1989 = vadd.f32 %v1988, 1.0
    %v1990 = vrcp.pop %v1989
    %v1991 = vmul.f32 1.0, %v1990
    %v1992 = vmax.f32 %v1983, 0.0
    %v1993 = vmul.f32 %v1991, %v1883
    %1995 = vrot.lane.b32.xlu0 %v1992, 32
    %v1996 = vpop.permute.xlu0 %1995
    %v1998 = vmul.f32 %v1991, %v1996
    %2000 = vrot.lane.b32.xlu0 %v1998, 32
    %v2001 = vpop.permute.xlu0 %2000
    %v2003 = vadd.f32 %v1993, %v2001
    %v2004 = vmax.f32 %v2003, 0.0
    %2006 = vrot.lane.b32.xlu0 %v2004, 32
    %v2007 = vpop.permute.xlu0 %2006
    %v2009 = vmul.f32 %v1991, %v2007
    %2011 = vrot.lane.b32.xlu0 %v2009, 64
    %v2012 = vpop.permute.xlu0 %2011
    %s2014 = scalar_lea.vmem [#allocation9], 14
    %2015 = vst.msk [vmem:[%s2014] sm:$0x3] %vm306, %v2012
    %2016 = vst.msk [vmem:[#allocation2] sm:$0x3] %vm306, %v2012
    %2018 = vrot.lane.b32.xlu0 %v2003, 96
    %v2019 = vpop.permute.xlu0 %2018
    %2021 = vst.msk [vmem:[#allocation3] sm:$0x3] %vm306, %v2019
    // Predicated region
    $region26: #{tpu_custom_call.1} parent=1 // pred_check
      %p2022 = pneg %p47
    $region27: #{tpu_custom_call.1} parent=1 // pred_check_branch
      %2024 = sbr.rel (%p2022) target = $region29
    $region28: #{tpu_custom_call.1} parent=1 // pred_region
      %2025 = vst.msk [vmem:[#allocation10] sm:$0x3] %vm306, %v1892
      %2027 = vrot.lane.b32.xlu0 %v1883, 96
      %v2028 = vpop.permute.xlu0 %2027
      %2030 = vst.msk [vmem:[#allocation12] sm:$0x3] %vm306, %v2028
      %s2031 = scalar_lea.vmem [#allocation10], 2
      %2032 = vst.msk [vmem:[%s2031] sm:$0x3] %vm306, %v2012
      %s2033 = scalar_lea.vmem [#allocation12], 2
      %2034 = vst.msk [vmem:[%s2033] sm:$0x3] %vm306, %v2019
    $region29: #{tpu_custom_call.1} parent=1 // pred_fallthru
      _
    // Predicated region
    $region30: #{tpu_custom_call.1} parent=1 // pred_check
      _
    $region31: #{tpu_custom_call.1} parent=1 // pred_check_branch
      %2036 = sbr.rel (0) target = $region33
    $region32: #{tpu_custom_call.1} parent=1 // pred_region
      %s2038 = ssub.s32 256, 256
      %2039 = vsyncadd [#allocation6], %s2038
      %s2040 = sshll.u32 [#allocation9], 4
      %s2041 = int_to_ptr.vmem [resolvable:$true] %s2040
      %2046 = dma.vmem_to_hbm [thread:$0]  %s2041, 256, %s3, [#allocation6], 32, 32, 2
    $region33: #{tpu_custom_call.1} parent=1 // pred_fallthru
      _
    // Predicated region
    $region34: #{tpu_custom_call.1} parent=1 // pred_check
      _
    $region35: #{tpu_custom_call.1} parent=1 // pred_check_branch
      %2048 = sbr.rel (0) target = $region37
    $region36: #{tpu_custom_call.1} parent=1 // pred_region
      %s2050 = ssub.s32 64, 64
      %2051 = vsyncadd [#allocation11], %s2050
      %s2052 = sshll.u32 [#allocation10], 4
      %s2053 = int_to_ptr.vmem [resolvable:$true] %s2052
      %2058 = dma.vmem_to_hbm [thread:$0]  %s2053, 64, %s4, [#allocation11], 32, 32, 2
    $region37: #{tpu_custom_call.1} parent=1 // pred_fallthru
      _
    // Predicated region
    $region38: #{tpu_custom_call.1} parent=1 // pred_check
      _
    $region39: #{tpu_custom_call.1} parent=1 // pred_check_branch
      %2060 = sbr.rel (0) target = $region41
    $region40: #{tpu_custom_call.1} parent=1 // pred_region
      %s2062 = ssub.s32 64, 64
      %2063 = vsyncadd [#allocation11], %s2062
      %s2064 = sshll.u32 [#allocation12], 4
      %s2065 = int_to_ptr.vmem [resolvable:$true] %s2064
      %2070 = dma.vmem_to_hbm [thread:$0]  %s2065, 64, %s5, [#allocation11], 32, 32, 2
    $region41: #{tpu_custom_call.1} parent=1 // pred_fallthru
      _
    // Predicated region
    $region42: #{tpu_custom_call.1} parent=1 // pred_check
      _
    $region43: #{tpu_custom_call.1} parent=1 // pred_check_branch
      %2072 = sbr.rel (0) target = $region45
    $region44: #{tpu_custom_call.1} parent=1 // pred_region
      %2073 = dma.done [#allocation6], 256
    $region45: #{tpu_custom_call.1} parent=1 // pred_fallthru
      _
    // Predicated region
    $region46: #{tpu_custom_call.1} parent=1 // pred_check
      _
    $region47: #{tpu_custom_call.1} parent=1 // pred_check_branch
      %2075 = sbr.rel (0) target = $region49
    $region48: #{tpu_custom_call.1} parent=1 // pred_region
      %2076 = dma.done [#allocation11], 64
    $region49: #{tpu_custom_call.1} parent=1 // pred_fallthru
      _
    // Predicated region
    $region50: #{tpu_custom_call.1} parent=1 // pred_check
      _
    $region51: #{tpu_custom_call.1} parent=1 // pred_check_branch
      %2078 = sbr.rel (0) target = $region53
    $region52: #{tpu_custom_call.1} parent=1 // pred_region
      %2079 = dma.done [#allocation11], 64
    $region53: #{tpu_custom_call.1} parent=1 // pred_fallthru
      _
    %2080 = vsyncpa [#allocation5], 1
    %2081 = vsyncpa [#allocation8], 1
    %2082 = vsyncpa [#allocation6], 1
    %2083 = vsyncpa [#allocation11], 1

</llo_original>
